<compile_context>
chip_gen: v6e
topology: v6e:2x2x1
jax: 0.10.0
libtpu: 0.0.40
codegen_flags: <defaults>
</compile_context>

<pallas_src>
import functools
import math

import jax
import jax.numpy as jnp
from jax.experimental import pallas as pl
from jax.experimental.pallas import tpu as pltpu


def _self_attn_kernel(xq_ref, xkv_ref, wq_ref, wk_ref, wv_ref, wo_ref, wff_ref,
                      vec_ref, o_ref, k_sc, v_sc, *, num_heads, kv_chunk):
    """One (batch, query-tile) grid step.

    Fuses: Q/K/V projection, multi-head attention (online softmax over KV chunks),
    out-projection, residual + LayerNorm1, Linear feed-forward, residual + LayerNorm2.
    K / V are projected once per batch row (qi == 0) into persistent VMEM scratch.
    """
    eps = 1e-5
    cdt = wq_ref.dtype                              # matmul compute dtype (bf16 or f32)

    x_q = xq_ref[0]                                 # (TQ, E) f32  (residual / LN path)
    TQ, E = x_q.shape
    S = xkv_ref.shape[1]
    H = num_heads
    D = E // H
    NC = S // kv_chunk                              # static number of KV chunks

    vecs = vec_ref[...].astype(jnp.float32)         # (9, E) packed small vectors (f32)
    bq, bk, bv = vecs[0:1], vecs[1:2], vecs[2:3]    # bq already carries the 1/sqrt(D) scale
    bo, bff = vecs[3:4], vecs[4:5]
    g1, b1 = vecs[5:6], vecs[6:7]
    g2, b2 = vecs[7:8], vecs[8:9]

    # ---- K / V: projected once per batch row, cached in VMEM scratch ----
    @pl.when(pl.program_id(1) == 0)
    def _():
        x_kv = xkv_ref[0]                           # (S, E), already in compute dtype
        k = jnp.dot(x_kv, wk_ref[...], preferred_element_type=jnp.float32) + bk   # (S, E)
        v = jnp.dot(x_kv, wv_ref[...], preferred_element_type=jnp.float32) + bv   # (S, E)
        k_sc[...] = k.reshape(NC, kv_chunk, H, D).transpose(0, 2, 1, 3).astype(k_sc.dtype)
        v_sc[...] = v.reshape(NC, kv_chunk, H, D).transpose(0, 2, 1, 3).astype(v_sc.dtype)

    # ---- Q projection (softmax scale folded into weight / bias in the wrapper) ----
    q = jnp.dot(x_q.astype(cdt), wq_ref[...],
                preferred_element_type=jnp.float32) + bq                          # (TQ, E)
    qh = jnp.transpose(q.reshape(TQ, H, D), (1, 0, 2)).astype(cdt)                # (H, TQ, D)

    # ---- online-softmax attention over KV chunks (live scores capped at (H,TQ,TK)) ----
    def kv_step(c, carry):
        m_prev, l_prev, acc_prev = carry
        kc = k_sc[c]                                # (H, TK, D) compute dtype
        vc = v_sc[c]
        s = jnp.einsum('hqd,hkd->hqk', qh, kc,
                       preferred_element_type=jnp.float32)                        # (H, TQ, TK)
        m_new = jnp.maximum(m_prev, jnp.max(s, axis=-1, keepdims=True))
        alpha = jnp.exp(m_prev - m_new)
        p = jnp.exp(s - m_new)
        l_new = alpha * l_prev + jnp.sum(p, axis=-1, keepdims=True)
        acc_new = alpha * acc_prev + jnp.einsum('hqk,hkd->hqd', p.astype(cdt), vc,
                                                preferred_element_type=jnp.float32)
        return m_new, l_new, acc_new

    m0 = jnp.full((H, TQ, 1), -1e30, jnp.float32)
    l0 = jnp.zeros((H, TQ, 1), jnp.float32)
    a0 = jnp.zeros((H, TQ, D), jnp.float32)
    _, l_fin, acc = jax.lax.fori_loop(0, NC, kv_step, (m0, l0, a0))
    o = acc * pl.reciprocal(l_fin, approx=True)                                   # (H, TQ, D)

    # ---- out-projection ----
    # TODO(synk): if profiles show XLU/copy time here, contract (h, d) against an
    # (H, D, E)-shaped Wo via dot_general instead of this transpose+reshape.
    attn = jnp.transpose(o, (1, 0, 2)).reshape(TQ, E)
    attn = jnp.dot(attn.astype(cdt), wo_ref[...],
                   preferred_element_type=jnp.float32) + bo

    # ---- residual + LayerNorm1 ----
    y1 = x_q + attn
    mu1 = jnp.mean(y1, axis=-1, keepdims=True)
    var1 = jnp.mean(jnp.square(y1 - mu1), axis=-1, keepdims=True)
    y1 = (y1 - mu1) * jax.lax.rsqrt(var1 + eps) * g1 + b1

    # ---- feed-forward (single Linear, no activation, per the module spec) ----
    ff = jnp.dot(y1.astype(cdt), wff_ref[...],
                 preferred_element_type=jnp.float32) + bff

    # ---- residual + LayerNorm2 ----
    y2 = y1 + ff
    mu2 = jnp.mean(y2, axis=-1, keepdims=True)
    var2 = jnp.mean(jnp.square(y2 - mu2), axis=-1, keepdims=True)
    y2 = (y2 - mu2) * jax.lax.rsqrt(var2 + eps) * g2 + b2

    o_ref[0] = y2.astype(o_ref.dtype)


def _pick_tile(S, candidates):
    for c in candidates:
        if S % c == 0:
            return c
    return S


def _vmem_limit_bytes():
    """~7/8 of physical VMEM, capped at 112 MiB: ~112 MiB on v5e/v6e, ~56 MiB on v7x."""
    try:
        cap = int(pltpu.get_tpu_info().vmem_capacity_bytes)
        if cap <= 0:
            raise ValueError
    except Exception:
        cap = 64 * 1024 * 1024          # conservative fallback, safe on every generation
    return max(32 * 1024 * 1024, min(cap * 7 // 8, 112 * 1024 * 1024))


def self_attention_layer(x, params, *, num_heads, compute_dtype=jnp.bfloat16):
    """x: (B, S, E) f32. params: PyTorch-convention weights. Returns (B, S, E)."""
    B, S, E = x.shape
    assert E % num_heads == 0, "embed_dim must be divisible by num_heads"
    D = E // num_heads
    scale = 1.0 / math.sqrt(D)

    # ---- one-time layout plumbing (pre-transpose, fold softmax scale, cast) ----
    w_in = params["in_proj_weight"]                                   # (3E, E) packed q/k/v
    wq_t = (jnp.transpose(w_in[0 * E:1 * E]) * scale).astype(compute_dtype)   # (E, E)
    wk_t = jnp.transpose(w_in[1 * E:2 * E]).astype(compute_dtype)
    wv_t = jnp.transpose(w_in[2 * E:3 * E]).astype(compute_dtype)
    wo_t = jnp.transpose(params["out_proj_weight"]).astype(compute_dtype)
    wff_t = jnp.transpose(params["ff_weight"]).astype(compute_dtype)

    b_in = params["in_proj_bias"]
    vecs = jnp.stack([
        b_in[0 * E:1 * E] * scale, b_in[1 * E:2 * E], b_in[2 * E:3 * E],
        params["out_proj_bias"], params["ff_bias"],
        params["ln1_weight"], params["ln1_bias"],
        params["ln2_weight"], params["ln2_bias"],
    ], axis=0).astype(jnp.float32)                                    # (9, E)

    tq = _pick_tile(S, (512, 256, 128, 64))      # query-row tile
    tk = _pick_tile(S, (512, 256, 128))          # KV chunk for the online-softmax loop
    n_kv_chunks = S // tk
    grid = (B, S // tq)

    # Constant-index blocks never change across the grid -> single-buffer them
    # (halves weight-resident VMEM; critical on v7x's 64 MiB).
    def const(shape):
        return pl.BlockSpec(shape, lambda b, qi: (0,) * len(shape),
                            pipeline_mode=pl.Buffered(1))

    x_kv = x.astype(compute_dtype)               # bf16 K/V source: halves the big row DMA

    return pl.pallas_call(
        functools.partial(_self_attn_kernel, num_heads=num_heads, kv_chunk=tk),
        out_shape=jax.ShapeDtypeStruct((B, S, E), x.dtype),
        grid=grid,
        in_specs=[
            pl.BlockSpec((1, tq, E), lambda b, qi: (b, qi, 0)),      # f32 query tile (residual)
            pl.BlockSpec((1, S, E), lambda b, qi: (b, 0, 0)),        # bf16 full row (K/V source)
            const((E, E)), const((E, E)), const((E, E)),             # Wq^T*scale, Wk^T, Wv^T
            const((E, E)), const((E, E)),                            # Wo^T, Wff^T
            const((9, E)),                                           # packed biases / LN params
        ],
        out_specs=pl.BlockSpec((1, tq, E), lambda b, qi: (b, qi, 0)),
        scratch_shapes=[
            pltpu.VMEM((n_kv_chunks, num_heads, tk, D), compute_dtype),   # K cache (per row)
            pltpu.VMEM((n_kv_chunks, num_heads, tk, D), compute_dtype),   # V cache (per row)
        ],
        compiler_params=pltpu.CompilerParams(
            dimension_semantics=("parallel", "arbitrary"),   # qi must be arbitrary: K/V scratch
            vmem_limit_bytes=_vmem_limit_bytes()),
    )(x, x_kv, wq_t, wk_t, wv_t, wo_t, wff_t, vecs)


# ---------------- pure-JAX reference for verification ----------------
def reference(x, p, num_heads):
    B, S, E = x.shape
    D = E // num_heads
    eps = 1e-5
    qkv = x @ p["in_proj_weight"].T + p["in_proj_bias"]
    q, k, v = jnp.split(qkv, 3, axis=-1)

    def heads(t):  # (B, S, E) -> (B, H, S, D)
        return t.reshape(B, S, num_heads, D).transpose(0, 2, 1, 3)

    qh, kh, vh = heads(q) / math.sqrt(D), heads(k), heads(v)
    s = jnp.einsum("bhqd,bhkd->bhqk", qh, kh)
    pattn = jax.nn.softmax(s, axis=-1)
    o = jnp.einsum("bhqk,bhkd->bhqd", pattn, vh)
    o = o.transpose(0, 2, 1, 3).reshape(B, S, E)
    attn = o @ p["out_proj_weight"].T + p["out_proj_bias"]

    def ln(y, g, b):
        mu = jnp.mean(y, -1, keepdims=True)
        var = jnp.mean((y - mu) ** 2, -1, keepdims=True)
        return (y - mu) * jax.lax.rsqrt(var + eps) * g + b

    y1 = ln(x + attn, p["ln1_weight"], p["ln1_bias"])
    ff = y1 @ p["ff_weight"].T + p["ff_bias"]
    return ln(y1 + ff, p["ln2_weight"], p["ln2_bias"])


if __name__ == "__main__":
    B, S, E, H = 2, 8, 32, 4
    key = jax.random.PRNGKey(0)
    ks = jax.random.split(key, 11)

    params = {
        "in_proj_weight": 0.05 * jax.random.normal(ks[0], (3 * E, E), jnp.float32),
        "in_proj_bias":   0.05 * jax.random.normal(ks[1], (3 * E,), jnp.float32),
        "out_proj_weight": 0.05 * jax.random.normal(ks[2], (E, E), jnp.float32),
        "out_proj_bias":   0.05 * jax.random.normal(ks[3], (E,), jnp.float32),
        "ff_weight":       0.05 * jax.random.normal(ks[4], (E, E), jnp.float32),
        "ff_bias":         0.05 * jax.random.normal(ks[5], (E,), jnp.float32),
        "ln1_weight": 1.0 + 0.1 * jax.random.normal(ks[6], (E,), jnp.float32),
        "ln1_bias":         0.1 * jax.random.normal(ks[7], (E,), jnp.float32),
        "ln2_weight": 1.0 + 0.1 * jax.random.normal(ks[8], (E,), jnp.float32),
        "ln2_bias":         0.1 * jax.random.normal(ks[9], (E,), jnp.float32),
    }
    x = jax.random.normal(ks[10], (B, S, E), jnp.float32)

    ref = reference(x, params, H)

    # f32-matmul path: tight check (only approx-reciprocal deviates from reference).
    out_f32 = jax.block_until_ready(
        self_attention_layer(x, params, num_heads=H, compute_dtype=jnp.float32))
    assert out_f32.shape == (B, S, E)
    err_f32 = jnp.max(jnp.abs(out_f32 - ref))
    assert jnp.allclose(out_f32, ref, atol=1e-2, rtol=1e-2), f"f32 max abs err {err_f32}"

    # bf16-matmul path (default, native MXU rate): looser tolerance.
    out_bf16 = jax.block_until_ready(
        self_attention_layer(x, params, num_heads=H))
    assert out_bf16.shape == (B, S, E)
    err_bf16 = jnp.max(jnp.abs(out_bf16 - ref))
    assert jnp.allclose(out_bf16, ref, atol=6e-2, rtol=6e-2), f"bf16 max abs err {err_bf16}"

    print("KERNEL_OK")
</pallas_src>

<mosaic_0001>
module attributes {stable_mosaic.version = 11 : i64} {
  func.func @_self_attn_kernel(%arg0: i32, %arg1: i32, %arg2: memref<1x8x32xf32, #tpu.memory_space<vmem>>, %arg3: memref<1x8x32xf32, #tpu.memory_space<vmem>>, %arg4: memref<32x32xf32, #tpu.memory_space<vmem>>, %arg5: memref<32x32xf32, #tpu.memory_space<vmem>>, %arg6: memref<32x32xf32, #tpu.memory_space<vmem>>, %arg7: memref<32x32xf32, #tpu.memory_space<vmem>>, %arg8: memref<32x32xf32, #tpu.memory_space<vmem>>, %arg9: memref<9x32xf32, #tpu.memory_space<vmem>>, %arg10: memref<1x8x32xf32, #tpu.memory_space<vmem>>, %arg11: memref<1x4x8x8xf32, #tpu.memory_space<vmem>>, %arg12: memref<1x4x8x8xf32, #tpu.memory_space<vmem>>) attributes {dimension_semantics = [#tpu.dimension_semantics<parallel>, #tpu.dimension_semantics<arbitrary>], iteration_bounds = array<i64: 2, 1>, scalar_prefetch = 0 : i64, scratch_operands = 2 : i64, tpu.core_type = #tpu.core_type<tc>, window_params = [{transform_indices = @transform_0, window_bounds = array<i64: 1, 8, 32>}, {transform_indices = @transform_1, window_bounds = array<i64: 1, 8, 32>}, {pipeline_mode = #tpu.pipeline_mode<synchronous>, transform_indices = @transform_2, window_bounds = array<i64: 32, 32>}, {pipeline_mode = #tpu.pipeline_mode<synchronous>, transform_indices = @transform_3, window_bounds = array<i64: 32, 32>}, {pipeline_mode = #tpu.pipeline_mode<synchronous>, transform_indices = @transform_4, window_bounds = array<i64: 32, 32>}, {pipeline_mode = #tpu.pipeline_mode<synchronous>, transform_indices = @transform_5, window_bounds = array<i64: 32, 32>}, {pipeline_mode = #tpu.pipeline_mode<synchronous>, transform_indices = @transform_6, window_bounds = array<i64: 32, 32>}, {pipeline_mode = #tpu.pipeline_mode<synchronous>, transform_indices = @transform_7, window_bounds = array<i64: 9, 32>}, {transform_indices = @transform_8, window_bounds = array<i64: 1, 8, 32>}]} {
    %c0 = arith.constant 0 : index
    %c0_0 = arith.constant 0 : index
    %c0_1 = arith.constant 0 : index
    %0 = vector.load %arg2[%c0, %c0_0, %c0_1] : memref<1x8x32xf32, #tpu.memory_space<vmem>>, vector<1x8x32xf32>
    %1 = vector.shape_cast %0 : vector<1x8x32xf32> to vector<8x32xf32>
    %c0_2 = arith.constant 0 : index
    %c0_3 = arith.constant 0 : index
    %2 = vector.load %arg9[%c0_2, %c0_3] : memref<9x32xf32, #tpu.memory_space<vmem>>, vector<9x32xf32>
    %3 = vector.extract_strided_slice %2 {offsets = [0, 0], sizes = [1, 32], strides = [1, 1]} : vector<9x32xf32> to vector<1x32xf32>
    %4 = vector.extract_strided_slice %2 {offsets = [1, 0], sizes = [1, 32], strides = [1, 1]} : vector<9x32xf32> to vector<1x32xf32>
    %5 = vector.extract_strided_slice %2 {offsets = [2, 0], sizes = [1, 32], strides = [1, 1]} : vector<9x32xf32> to vector<1x32xf32>
    %6 = vector.extract_strided_slice %2 {offsets = [3, 0], sizes = [1, 32], strides = [1, 1]} : vector<9x32xf32> to vector<1x32xf32>
    %7 = vector.extract_strided_slice %2 {offsets = [4, 0], sizes = [1, 32], strides = [1, 1]} : vector<9x32xf32> to vector<1x32xf32>
    %8 = vector.extract_strided_slice %2 {offsets = [5, 0], sizes = [1, 32], strides = [1, 1]} : vector<9x32xf32> to vector<1x32xf32>
    %9 = vector.extract_strided_slice %2 {offsets = [6, 0], sizes = [1, 32], strides = [1, 1]} : vector<9x32xf32> to vector<1x32xf32>
    %10 = vector.extract_strided_slice %2 {offsets = [7, 0], sizes = [1, 32], strides = [1, 1]} : vector<9x32xf32> to vector<1x32xf32>
    %11 = vector.extract_strided_slice %2 {offsets = [8, 0], sizes = [1, 32], strides = [1, 1]} : vector<9x32xf32> to vector<1x32xf32>
    %c0_i32 = arith.constant 0 : i32
    %12 = arith.cmpi eq, %arg1, %c0_i32 : i32
    %13 = arith.extui %12 : i1 to i32
    %c0_i32_4 = arith.constant 0 : i32
    %14 = arith.cmpi ne, %13, %c0_i32_4 : i32
    scf.if %14 {
      %c0_40 = arith.constant 0 : index
      %c0_41 = arith.constant 0 : index
      %c0_42 = arith.constant 0 : index
      %109 = vector.load %arg3[%c0_40, %c0_41, %c0_42] : memref<1x8x32xf32, #tpu.memory_space<vmem>>, vector<1x8x32xf32>
      %110 = vector.shape_cast %109 : vector<1x8x32xf32> to vector<8x32xf32>
      %c0_43 = arith.constant 0 : index
      %c0_44 = arith.constant 0 : index
      %111 = vector.load %arg5[%c0_43, %c0_44] : memref<32x32xf32, #tpu.memory_space<vmem>>, vector<32x32xf32>
      %cst_45 = arith.constant dense<0.000000e+00> : vector<8x32xf32>
      %112 = tpu.matmul %110, %111, %cst_45 {dimension_numbers = #tpu.dot_dimension_numbers<[1], [0], [0], [1], [0, 0, 1, 1], [], []>} : vector<8x32xf32>, vector<32x32xf32>, vector<8x32xf32> -> vector<8x32xf32>
      %113 = vector.broadcast %4 : vector<1x32xf32> to vector<8x32xf32>
      %114 = arith.addf %112, %113 : vector<8x32xf32>
      %c0_46 = arith.constant 0 : index
      %c0_47 = arith.constant 0 : index
      %115 = vector.load %arg6[%c0_46, %c0_47] : memref<32x32xf32, #tpu.memory_space<vmem>>, vector<32x32xf32>
      %cst_48 = arith.constant dense<0.000000e+00> : vector<8x32xf32>
      %116 = tpu.matmul %110, %115, %cst_48 {dimension_numbers = #tpu.dot_dimension_numbers<[1], [0], [0], [1], [0, 0, 1, 1], [], []>} : vector<8x32xf32>, vector<32x32xf32>, vector<8x32xf32> -> vector<8x32xf32>
      %117 = vector.broadcast %5 : vector<1x32xf32> to vector<8x32xf32>
      %118 = arith.addf %116, %117 : vector<8x32xf32>
      %119 = vector.shape_cast %114 : vector<8x32xf32> to vector<1x8x4x8xf32>
      %120 = tpu.transpose %119, [0, 2, 1, 3] : vector<1x8x4x8xf32> -> vector<1x4x8x8xf32>
      %c0_49 = arith.constant 0 : index
      %c0_50 = arith.constant 0 : index
      %c0_51 = arith.constant 0 : index
      %c0_52 = arith.constant 0 : index
      %121 = vector.load %arg11[%c0_49, %c0_50, %c0_51, %c0_52] : memref<1x4x8x8xf32, #tpu.memory_space<vmem>>, vector<1x4x8x8xf32>
      tpu.vector_store %arg11[%c0_49, %c0_50, %c0_51, %c0_52], %120 {strides = array<i32>} : memref<1x4x8x8xf32, #tpu.memory_space<vmem>>, vector<1x4x8x8xf32>,
      %122 = vector.shape_cast %118 : vector<8x32xf32> to vector<1x8x4x8xf32>
      %123 = tpu.transpose %122, [0, 2, 1, 3] : vector<1x8x4x8xf32> -> vector<1x4x8x8xf32>
      %c0_53 = arith.constant 0 : index
      %c0_54 = arith.constant 0 : index
      %c0_55 = arith.constant 0 : index
      %c0_56 = arith.constant 0 : index
      %124 = vector.load %arg12[%c0_53, %c0_54, %c0_55, %c0_56] : memref<1x4x8x8xf32, #tpu.memory_space<vmem>>, vector<1x4x8x8xf32>
      tpu.vector_store %arg12[%c0_53, %c0_54, %c0_55, %c0_56], %123 {strides = array<i32>} : memref<1x4x8x8xf32, #tpu.memory_space<vmem>>, vector<1x4x8x8xf32>,
    } else {
    }
    %c0_5 = arith.constant 0 : index
    %c0_6 = arith.constant 0 : index
    %15 = vector.load %arg4[%c0_5, %c0_6] : memref<32x32xf32, #tpu.memory_space<vmem>>, vector<32x32xf32>
    %cst = arith.constant dense<0.000000e+00> : vector<8x32xf32>
    %16 = tpu.matmul %1, %15, %cst {dimension_numbers = #tpu.dot_dimension_numbers<[1], [0], [0], [1], [0, 0, 1, 1], [], []>} : vector<8x32xf32>, vector<32x32xf32>, vector<8x32xf32> -> vector<8x32xf32>
    %17 = vector.broadcast %3 : vector<1x32xf32> to vector<8x32xf32>
    %18 = arith.addf %16, %17 : vector<8x32xf32>
    %19 = vector.shape_cast %18 : vector<8x32xf32> to vector<8x4x8xf32>
    %20 = tpu.transpose %19, [1, 0, 2] : vector<8x4x8xf32> -> vector<4x8x8xf32>
    %cst_7 = arith.constant -1.000000e+30 : f32
    %21 = vector.broadcast %cst_7 : f32 to vector<4x8x1xf32>
    %cst_8 = arith.constant 0.000000e+00 : f32
    %22 = vector.broadcast %cst_8 : f32 to vector<4x8x1xf32>
    %cst_9 = arith.constant 0.000000e+00 : f32
    %23 = vector.broadcast %cst_9 : f32 to vector<4x8x8xf32>
    %c0_i32_10 = arith.constant 0 : i32
    %24 = arith.index_cast %c0_i32_10 : i32 to index
    %c0_11 = arith.constant 0 : index
    %c0_12 = arith.constant 0 : index
    %c0_13 = arith.constant 0 : index
    %25 = vector.load %arg11[%24, %c0_11, %c0_12, %c0_13] : memref<1x4x8x8xf32, #tpu.memory_space<vmem>>, vector<1x4x8x8xf32>
    %26 = vector.shape_cast %25 : vector<1x4x8x8xf32> to vector<4x8x8xf32>
    %27 = arith.index_cast %c0_i32_10 : i32 to index
    %c0_14 = arith.constant 0 : index
    %c0_15 = arith.constant 0 : index
    %c0_16 = arith.constant 0 : index
    %28 = vector.load %arg12[%27, %c0_14, %c0_15, %c0_16] : memref<1x4x8x8xf32, #tpu.memory_space<vmem>>, vector<1x4x8x8xf32>
    %29 = vector.shape_cast %28 : vector<1x4x8x8xf32> to vector<4x8x8xf32>
    "tpu.trace_start"() <{level = 10 : i32, message = "hqd,hkd->hqk"}> : () -> ()
    %cst_17 = arith.constant dense<0.000000e+00> : vector<4x8x8xf32>
    %30 = tpu.matmul %20, %26, %cst_17 {dimension_numbers = #tpu.dot_dimension_numbers<[2], [2], [1], [1], [0, 0, 0, 1, 1, 1], [0], [0]>} : vector<4x8x8xf32>, vector<4x8x8xf32>, vector<4x8x8xf32> -> vector<4x8x8xf32>
    "tpu.trace_stop"() : () -> ()
    %cst_18 = arith.constant dense<0xFF800000> : vector<4x8xf32>
    %31 = vector.multi_reduction <maximumf>, %30, %cst_18 [2] : vector<4x8x8xf32> to vector<4x8xf32>
    %32 = vector.shape_cast %31 : vector<4x8xf32> to vector<4x8x1xf32>
    %33 = arith.maximumf %21, %32 : vector<4x8x1xf32>
    %34 = arith.subf %21, %33 : vector<4x8x1xf32>
    %35 = math.exp %34 : vector<4x8x1xf32>
    %36 = vector.broadcast %33 : vector<4x8x1xf32> to vector<4x8x8xf32>
    %37 = arith.subf %30, %36 : vector<4x8x8xf32>
    %38 = math.exp %37 : vector<4x8x8xf32>
    %39 = arith.mulf %35, %22 : vector<4x8x1xf32>
    %cst_19 = arith.constant dense<0.000000e+00> : vector<4x8xf32>
    %40 = vector.multi_reduction <add>, %38, %cst_19 [2] : vector<4x8x8xf32> to vector<4x8xf32>
    %41 = vector.shape_cast %40 : vector<4x8xf32> to vector<4x8x1xf32>
    %42 = arith.addf %39, %41 : vector<4x8x1xf32>
    %43 = vector.broadcast %35 : vector<4x8x1xf32> to vector<4x8x8xf32>
    %44 = arith.mulf %43, %23 : vector<4x8x8xf32>
    "tpu.trace_start"() <{level = 10 : i32, message = "hqk,hkd->hqd"}> : () -> ()
    %cst_20 = arith.constant dense<0.000000e+00> : vector<4x8x8xf32>
    %45 = tpu.matmul %38, %29, %cst_20 {dimension_numbers = #tpu.dot_dimension_numbers<[2], [1], [1], [2], [0, 0, 0, 1, 1, 2], [0], [0]>} : vector<4x8x8xf32>, vector<4x8x8xf32>, vector<4x8x8xf32> -> vector<4x8x8xf32>
    "tpu.trace_stop"() : () -> ()
    %46 = arith.addf %44, %45 : vector<4x8x8xf32>
    %c1_i32 = arith.constant 1 : i32
    %47 = tpu.reciprocal %42 {approx = true} : vector<4x8x1xf32> -> vector<4x8x1xf32>
    %48 = vector.broadcast %47 : vector<4x8x1xf32> to vector<4x8x8xf32>
    %49 = arith.mulf %46, %48 : vector<4x8x8xf32>
    %50 = tpu.transpose %49, [1, 0, 2] : vector<4x8x8xf32> -> vector<8x4x8xf32>
    %51 = vector.shape_cast %50 : vector<8x4x8xf32> to vector<8x32xf32>
    %c0_21 = arith.constant 0 : index
    %c0_22 = arith.constant 0 : index
    %52 = vector.load %arg7[%c0_21, %c0_22] : memref<32x32xf32, #tpu.memory_space<vmem>>, vector<32x32xf32>
    %cst_23 = arith.constant dense<0.000000e+00> : vector<8x32xf32>
    %53 = tpu.matmul %51, %52, %cst_23 {dimension_numbers = #tpu.dot_dimension_numbers<[1], [0], [0], [1], [0, 0, 1, 1], [], []>} : vector<8x32xf32>, vector<32x32xf32>, vector<8x32xf32> -> vector<8x32xf32>
    %54 = vector.broadcast %6 : vector<1x32xf32> to vector<8x32xf32>
    %55 = arith.addf %53, %54 : vector<8x32xf32>
    %56 = arith.addf %1, %55 : vector<8x32xf32>
    %cst_24 = arith.constant dense<0.000000e+00> : vector<8xf32>
    %57 = vector.multi_reduction <add>, %56, %cst_24 [1] : vector<8x32xf32> to vector<8xf32>
    %58 = vector.shape_cast %57 : vector<8xf32> to vector<8x1xf32>
    %cst_25 = arith.constant 3.200000e+01 : f32
    %59 = vector.broadcast %cst_25 : f32 to vector<8x1xf32>
    %60 = arith.divf %58, %59 : vector<8x1xf32>
    %61 = vector.broadcast %60 : vector<8x1xf32> to vector<8x32xf32>
    %62 = arith.subf %56, %61 : vector<8x32xf32>
    %63 = arith.mulf %62, %62 : vector<8x32xf32>
    %cst_26 = arith.constant dense<0.000000e+00> : vector<8xf32>
    %64 = vector.multi_reduction <add>, %63, %cst_26 [1] : vector<8x32xf32> to vector<8xf32>
    %65 = vector.shape_cast %64 : vector<8xf32> to vector<8x1xf32>
    %cst_27 = arith.constant 3.200000e+01 : f32
    %66 = vector.broadcast %cst_27 : f32 to vector<8x1xf32>
    %67 = arith.divf %65, %66 : vector<8x1xf32>
    %68 = vector.broadcast %60 : vector<8x1xf32> to vector<8x32xf32>
    %69 = arith.subf %56, %68 : vector<8x32xf32>
    %cst_28 = arith.constant 9.99999974E-6 : f32
    %70 = vector.broadcast %cst_28 : f32 to vector<8x1xf32>
    %71 = arith.addf %67, %70 : vector<8x1xf32>
    %72 = math.rsqrt %71 : vector<8x1xf32>
    %73 = vector.broadcast %72 : vector<8x1xf32> to vector<8x32xf32>
    %74 = arith.mulf %69, %73 : vector<8x32xf32>
    %75 = vector.broadcast %8 : vector<1x32xf32> to vector<8x32xf32>
    %76 = arith.mulf %74, %75 : vector<8x32xf32>
    %77 = vector.broadcast %9 : vector<1x32xf32> to vector<8x32xf32>
    %78 = arith.addf %76, %77 : vector<8x32xf32>
    %c0_29 = arith.constant 0 : index
    %c0_30 = arith.constant 0 : index
    %79 = vector.load %arg8[%c0_29, %c0_30] : memref<32x32xf32, #tpu.memory_space<vmem>>, vector<32x32xf32>
    %cst_31 = arith.constant dense<0.000000e+00> : vector<8x32xf32>
    %80 = tpu.matmul %78, %79, %cst_31 {dimension_numbers = #tpu.dot_dimension_numbers<[1], [0], [0], [1], [0, 0, 1, 1], [], []>} : vector<8x32xf32>, vector<32x32xf32>, vector<8x32xf32> -> vector<8x32xf32>
    %81 = vector.broadcast %7 : vector<1x32xf32> to vector<8x32xf32>
    %82 = arith.addf %80, %81 : vector<8x32xf32>
    %83 = arith.addf %78, %82 : vector<8x32xf32>
    %cst_32 = arith.constant dense<0.000000e+00> : vector<8xf32>
    %84 = vector.multi_reduction <add>, %83, %cst_32 [1] : vector<8x32xf32> to vector<8xf32>
    %85 = vector.shape_cast %84 : vector<8xf32> to vector<8x1xf32>
    %cst_33 = arith.constant 3.200000e+01 : f32
    %86 = vector.broadcast %cst_33 : f32 to vector<8x1xf32>
    %87 = arith.divf %85, %86 : vector<8x1xf32>
    %88 = vector.broadcast %87 : vector<8x1xf32> to vector<8x32xf32>
    %89 = arith.subf %83, %88 : vector<8x32xf32>
    %90 = arith.mulf %89, %89 : vector<8x32xf32>
    %cst_34 = arith.constant dense<0.000000e+00> : vector<8xf32>
    %91 = vector.multi_reduction <add>, %90, %cst_34 [1] : vector<8x32xf32> to vector<8xf32>
    %92 = vector.shape_cast %91 : vector<8xf32> to vector<8x1xf32>
    %cst_35 = arith.constant 3.200000e+01 : f32
    %93 = vector.broadcast %cst_35 : f32 to vector<8x1xf32>
    %94 = arith.divf %92, %93 : vector<8x1xf32>
    %95 = vector.broadcast %87 : vector<8x1xf32> to vector<8x32xf32>
    %96 = arith.subf %83, %95 : vector<8x32xf32>
    %cst_36 = arith.constant 9.99999974E-6 : f32
    %97 = vector.broadcast %cst_36 : f32 to vector<8x1xf32>
    %98 = arith.addf %94, %97 : vector<8x1xf32>
    %99 = math.rsqrt %98 : vector<8x1xf32>
    %100 = vector.broadcast %99 : vector<8x1xf32> to vector<8x32xf32>
    %101 = arith.mulf %96, %100 : vector<8x32xf32>
    %102 = vector.broadcast %10 : vector<1x32xf32> to vector<8x32xf32>
    %103 = arith.mulf %101, %102 : vector<8x32xf32>
    %104 = vector.broadcast %11 : vector<1x32xf32> to vector<8x32xf32>
    %105 = arith.addf %103, %104 : vector<8x32xf32>
    %c0_37 = arith.constant 0 : index
    %c0_38 = arith.constant 0 : index
    %c0_39 = arith.constant 0 : index
    %106 = vector.load %arg10[%c0_37, %c0_38, %c0_39] : memref<1x8x32xf32, #tpu.memory_space<vmem>>, vector<1x8x32xf32>
    %107 = vector.shape_cast %106 : vector<1x8x32xf32> to vector<8x32xf32>
    %108 = vector.shape_cast %105 : vector<8x32xf32> to vector<1x8x32xf32>
    tpu.vector_store %arg10[%c0_37, %c0_38, %c0_39], %108 {strides = array<i32>} : memref<1x8x32xf32, #tpu.memory_space<vmem>>, vector<1x8x32xf32>,
    return
  }
  func.func @transform_0(%arg0: i32, %arg1: i32) -> (i32, i32, i32) {
    %c0_i32 = arith.constant 0 : i32
    %c0_i32_0 = arith.constant 0 : i32
    return %arg0, %arg1, %c0_i32 : i32, i32, i32
  }
  func.func @transform_1(%arg0: i32, %arg1: i32) -> (i32, i32, i32) {
    %c0_i32 = arith.constant 0 : i32
    %c0_i32_0 = arith.constant 0 : i32
    %c0_i32_1 = arith.constant 0 : i32
    return %arg0, %c0_i32, %c0_i32_0 : i32, i32, i32
  }
  func.func @transform_2(%arg0: i32, %arg1: i32) -> (i32, i32) {
    %c0_i32 = arith.constant 0 : i32
    %c0_i32_0 = arith.constant 0 : i32
    %c0_i32_1 = arith.constant 0 : i32
    return %c0_i32, %c0_i32_0 : i32, i32
  }
  func.func @transform_3(%arg0: i32, %arg1: i32) -> (i32, i32) {
    %c0_i32 = arith.constant 0 : i32
    %c0_i32_0 = arith.constant 0 : i32
    %c0_i32_1 = arith.constant 0 : i32
    return %c0_i32, %c0_i32_0 : i32, i32
  }
  func.func @transform_4(%arg0: i32, %arg1: i32) -> (i32, i32) {
    %c0_i32 = arith.constant 0 : i32
    %c0_i32_0 = arith.constant 0 : i32
    %c0_i32_1 = arith.constant 0 : i32
    return %c0_i32, %c0_i32_0 : i32, i32
  }
  func.func @transform_5(%arg0: i32, %arg1: i32) -> (i32, i32) {
    %c0_i32 = arith.constant 0 : i32
    %c0_i32_0 = arith.constant 0 : i32
    %c0_i32_1 = arith.constant 0 : i32
    return %c0_i32, %c0_i32_0 : i32, i32
  }
  func.func @transform_6(%arg0: i32, %arg1: i32) -> (i32, i32) {
    %c0_i32 = arith.constant 0 : i32
    %c0_i32_0 = arith.constant 0 : i32
    %c0_i32_1 = arith.constant 0 : i32
    return %c0_i32, %c0_i32_0 : i32, i32
  }
  func.func @transform_7(%arg0: i32, %arg1: i32) -> (i32, i32) {
    %c0_i32 = arith.constant 0 : i32
    %c0_i32_0 = arith.constant 0 : i32
    %c0_i32_1 = arith.constant 0 : i32
    return %c0_i32, %c0_i32_0 : i32, i32
  }
  func.func @transform_8(%arg0: i32, %arg1: i32) -> (i32, i32, i32) {
    %c0_i32 = arith.constant 0 : i32
    %c0_i32_0 = arith.constant 0 : i32
    return %arg0, %arg1, %c0_i32 : i32, i32, i32
  }
}

</mosaic_0001>

<llo_original>
// kernel: tpu_custom_call.1
$region0: #{tpu_custom_call.1}
  #allocation0 [shape = 'u32[]', space=smem, size = 0x4, offset = 0x4, fixed_abs, tag = 'smem constant byte address 0x4 - core index']
  #allocation1 [shape = 'u32[144,128]{1,0:T(1,128)}', space=vmem, size = 0x12000, scoped, tag = 'internal scratch']
  #allocation2 [shape = 'f32[1,4,8,8]{3,2,1,0:T(8,128)}', space=vmem, size = 0x4000, scoped, tag = 'scratch operand']
  #allocation3 [shape = 'f32[1,4,8,8]{3,2,1,0:T(8,128)}', space=vmem, size = 0x4000, scoped, tag = 'scratch operand']
  %s0 = inlined_call_operand.hbm [shape: f32[2,8,32], index: 0, kind: input, shape index: {}]
  %s1 = inlined_call_operand.hbm [shape: f32[2,8,32], index: 1, kind: input, shape index: {}]
  %s2 = inlined_call_operand.hbm [shape: f32[32,32], index: 2, kind: input, shape index: {}]
  %s3 = inlined_call_operand.hbm [shape: f32[32,32], index: 3, kind: input, shape index: {}]
  %s4 = inlined_call_operand.hbm [shape: f32[32,32], index: 4, kind: input, shape index: {}]
  %s5 = inlined_call_operand.hbm [shape: f32[32,32], index: 5, kind: input, shape index: {}]
  %s6 = inlined_call_operand.hbm [shape: f32[32,32], index: 6, kind: input, shape index: {}]
  %s7 = inlined_call_operand.hbm [shape: f32[9,32], index: 7, kind: input, shape index: {}]
  %s8 = inlined_call_operand.hbm [shape: f32[2,8,32], index: 8, kind: output, shape index: {}]
  %s9 = sld [smem:[#allocation0]]
  $region101: #{tpu_custom_call.1} parent=0
    _
  %s11 = ssub.s32 1, %s9
  %s12 = scalar_select 0, %s11, %s9
  $region1: #{tpu_custom_call.1} parent=0
    #allocation4 [shape = 'u8[8192]{0}', space=vmem, size = 0x2000, scoped, tag = 'input window, operand 0']
    #allocation5 [shape = 's32[2]{0}', space=sflag, size = 0x8, scoped, tag = 'scoped memory for tpu_custom_call.1']
    #allocation6 [shape = 's32[2]{0}', space=sflag, size = 0x8, scoped, tag = 'scoped memory for tpu_custom_call.1']
    #allocation7 [shape = 'u8[8192]{0}', space=vmem, size = 0x2000, scoped, tag = 'input window, operand 1']
    #allocation8 [shape = 's32[2]{0}', space=sflag, size = 0x8, scoped, tag = 'scoped memory for tpu_custom_call.1']
    #allocation9 [shape = 'u8[16384]{0}', space=vmem, size = 0x4000, scoped, tag = 'input window, operand 2, single buffered']
    #allocation10 [shape = 'u8[16384]{0}', space=vmem, size = 0x4000, scoped, tag = 'input window, operand 3, single buffered']
    #allocation11 [shape = 's32[1]{0}', space=sflag, size = 0x4, scoped, tag = 'scoped memory for tpu_custom_call.1']
    #allocation12 [shape = 'u8[16384]{0}', space=vmem, size = 0x4000, scoped, tag = 'input window, operand 4, single buffered']
    #allocation13 [shape = 'u8[16384]{0}', space=vmem, size = 0x4000, scoped, tag = 'input window, operand 5, single buffered']
    #allocation14 [shape = 's32[1]{0}', space=sflag, size = 0x4, scoped, tag = 'scoped memory for tpu_custom_call.1']
    #allocation15 [shape = 'u8[16384]{0}', space=vmem, size = 0x4000, scoped, tag = 'input window, operand 6, single buffered']
    #allocation16 [shape = 'u8[8192]{0}', space=vmem, size = 0x2000, scoped, tag = 'input window, operand 7, single buffered']
    #allocation17 [shape = 's32[1]{0}', space=sflag, size = 0x4, scoped, tag = 'scoped memory for tpu_custom_call.1']
    #allocation18 [shape = 'u8[8192]{0}', space=vmem, size = 0x2000, scoped, tag = 'output window, operand 0']
    %13 = vsyncpa [#allocation5], 0
    %s14 = scalar_lea.sflag [#allocation5], 1
    %15 = vsyncpa %s14, 0
    %16 = vsyncpa [#allocation8], 0
    %s17 = scalar_lea.sflag [#allocation8], 1
    %18 = vsyncpa %s17, 0
    %19 = vsyncpa [#allocation11], 0
    %20 = vsyncpa [#allocation14], 0
    %21 = vsyncpa [#allocation17], 0
    %22 = vsyncpa [#allocation6], 0
    %s23 = scalar_lea.sflag [#allocation6], 1
    %24 = vsyncpa %s23, 0
    loop: start=0, step=1, limit=4
    $region2: #{tpu_custom_call.1} parent=1 // loop_pre_header
      _
    $region3: #{tpu_custom_call.1} parent=1 // loop_header
      %s26 = sphi 0, %s30
      %p27 = scmp.ge.s32.totalorder %s26, 4
      %s33 = sphi 0, %s45
      %s34 = sphi 0, %s41
      %s35 = sphi 0, %s33
      %s36 = sphi 0, %s34
      %s37 = sphi 0, %s35
      %s38 = sphi 0, %s36
      %s50 = sphi 0, %s52
      %s53 = sphi 0, %s50
      %s54 = sphi 0, %s53
      %s70 = sphi 0, %s54
      %s76 = sphi 0, %s78
      %s79 = sphi 0, %s76
      %s80 = sphi 0, %s79
      %s96 = sphi 0, %s80
      %s100 = sphi 0, %s100
      %s102 = sphi 0, %s100
      %s103 = sphi 0, %s102
      %s117 = sphi 0, %s103
      %s121 = sphi 0, %s121
      %s123 = sphi 0, %s121
      %s124 = sphi 0, %s123
      %s138 = sphi 0, %s124
      %s142 = sphi 0, %s142
      %s144 = sphi 0, %s142
      %s145 = sphi 0, %s144
      %s159 = sphi 0, %s145
      %s163 = sphi 0, %s163
      %s165 = sphi 0, %s163
      %s166 = sphi 0, %s165
      %s180 = sphi 0, %s166
      %s184 = sphi 0, %s184
      %s186 = sphi 0, %s184
      %s187 = sphi 0, %s186
      %s201 = sphi 0, %s187
      %s205 = sphi 0, %s205
      %s207 = sphi 0, %s205
      %s208 = sphi 0, %s207
      %s222 = sphi 0, %s208
      %s230 = sphi 0, %s232
      %s233 = sphi 0, %s230
      %s234 = sphi 0, %s233
      %s250 = sphi 0, %s234
    $region4: #{tpu_custom_call.1} parent=1 // loop_header_branch
      %29 = sbr.rel (%p27) target = $region8
    $region5: #{tpu_custom_call.1} parent=1 // loop_body
      %s31 = ssub.s32 %s26, 1
      %s32 = ssub.s32 %s26, 2
      %s39 = sadd.s32 1, %s34
      %p40 = scmp.ge.s32.totalorder %s39, 1
      %s41 = scalar_select %p40, 0, %s39
      %s42 = sadd.s32 1, %s33
      %s43 = scalar_select %p40, %s42, %s33
      %p44 = scmp.ge.s32.totalorder %s43, 2
      %s45 = scalar_select %p44, 0, %s43
      %s46 = ssub.s32 %s33, %s45
      %s47 = ssub.s32 %s34, %s41
      %s48 = sor.u32 %s46, %s47
      %p49 = scmp.eq.s32.totalorder %s48, 0
      %s51 = sadd.s32 %s50, 1
      %s52 = scalar_select %p49, %s50, %s51
      %p55 = pneg %p49
      %p56 = scmp.eq.s32.totalorder %s26, 1
      %p57 = por %p55, %p56
      %p58 = scmp.ne.s32.totalorder %s50, %s53
      %p59 = scmp.eq.s32.totalorder %s26, 0
      %p60 = por %p58, %p59
      %p61 = scmp.ne.s32.totalorder %s50, %s53
      %p62 = scmp.eq.s32.totalorder %s31, 1
      %p63 = por %p61, %p62
      %p64 = scmp.ne.s32.totalorder %s53, %s54
      %p65 = scmp.eq.s32.totalorder %s31, 0
      %p66 = por %p64, %p65
      %p67 = scmp.ne.s32.totalorder %s53, %s54
      %p68 = scmp.eq.s32.totalorder %s32, 1
      %p69 = por %p67, %p68
      %p71 = scmp.ne.s32.totalorder %s54, %s70
      %p72 = scmp.eq.s32.totalorder %s32, 0
      %p73 = por %p71, %p72
      %s74 = ssub.s32 %s33, %s45
      %p75 = scmp.eq.s32.totalorder %s74, 0
      %s77 = sadd.s32 %s76, 1
      %s78 = scalar_select %p75, %s76, %s77
      %p81 = pneg %p75
      %p82 = scmp.eq.s32.totalorder %s26, 1
      %p83 = por %p81, %p82
      %p84 = scmp.ne.s32.totalorder %s76, %s79
      %p85 = scmp.eq.s32.totalorder %s26, 0
      %p86 = por %p84, %p85
      %p87 = scmp.ne.s32.totalorder %s76, %s79
      %p88 = scmp.eq.s32.totalorder %s31, 1
      %p89 = por %p87, %p88
      %p90 = scmp.ne.s32.totalorder %s79, %s80
      %p91 = scmp.eq.s32.totalorder %s31, 0
      %p92 = por %p90, %p91
      %p93 = scmp.ne.s32.totalorder %s79, %s80
      %p94 = scmp.eq.s32.totalorder %s32, 1
      %p95 = por %p93, %p94
      %p97 = scmp.ne.s32.totalorder %s80, %s96
      %p98 = scmp.eq.s32.totalorder %s32, 0
      %p99 = por %p97, %p98
      %s101 = sadd.s32 %s100, 1
      %p104 = scmp.eq.s32.totalorder %s26, 1
      %p105 = scmp.ne.s32.totalorder %s100, %s102
      %p106 = scmp.eq.s32.totalorder %s26, 0
      %p107 = por %p105, %p106
      %p108 = scmp.ne.s32.totalorder %s100, %s102
      %p109 = scmp.eq.s32.totalorder %s31, 1
      %p110 = por %p108, %p109
      %p111 = scmp.ne.s32.totalorder %s102, %s103
      %p112 = scmp.eq.s32.totalorder %s31, 0
      %p113 = por %p111, %p112
      %p114 = scmp.ne.s32.totalorder %s102, %s103
      %p115 = scmp.eq.s32.totalorder %s32, 1
      %p116 = por %p114, %p115
      %p118 = scmp.ne.s32.totalorder %s103, %s117
      %p119 = scmp.eq.s32.totalorder %s32, 0
      %p120 = por %p118, %p119
      %s122 = sadd.s32 %s121, 1
      %p125 = scmp.eq.s32.totalorder %s26, 1
      %p126 = scmp.ne.s32.totalorder %s121, %s123
      %p127 = scmp.eq.s32.totalorder %s26, 0
      %p128 = por %p126, %p127
      %p129 = scmp.ne.s32.totalorder %s121, %s123
      %p130 = scmp.eq.s32.totalorder %s31, 1
      %p131 = por %p129, %p130
      %p132 = scmp.ne.s32.totalorder %s123, %s124
      %p133 = scmp.eq.s32.totalorder %s31, 0
      %p134 = por %p132, %p133
      %p135 = scmp.ne.s32.totalorder %s123, %s124
      %p136 = scmp.eq.s32.totalorder %s32, 1
      %p137 = por %p135, %p136
      %p139 = scmp.ne.s32.totalorder %s124, %s138
      %p140 = scmp.eq.s32.totalorder %s32, 0
      %p141 = por %p139, %p140
      %s143 = sadd.s32 %s142, 1
      %p146 = scmp.eq.s32.totalorder %s26, 1
      %p147 = scmp.ne.s32.totalorder %s142, %s144
      %p148 = scmp.eq.s32.totalorder %s26, 0
      %p149 = por %p147, %p148
      %p150 = scmp.ne.s32.totalorder %s142, %s144
      %p151 = scmp.eq.s32.totalorder %s31, 1
      %p152 = por %p150, %p151
      %p153 = scmp.ne.s32.totalorder %s144, %s145
      %p154 = scmp.eq.s32.totalorder %s31, 0
      %p155 = por %p153, %p154
      %p156 = scmp.ne.s32.totalorder %s144, %s145
      %p157 = scmp.eq.s32.totalorder %s32, 1
      %p158 = por %p156, %p157
      %p160 = scmp.ne.s32.totalorder %s145, %s159
      %p161 = scmp.eq.s32.totalorder %s32, 0
      %p162 = por %p160, %p161
      %s164 = sadd.s32 %s163, 1
      %p167 = scmp.eq.s32.totalorder %s26, 1
      %p168 = scmp.ne.s32.totalorder %s163, %s165
      %p169 = scmp.eq.s32.totalorder %s26, 0
      %p170 = por %p168, %p169
      %p171 = scmp.ne.s32.totalorder %s163, %s165
      %p172 = scmp.eq.s32.totalorder %s31, 1
      %p173 = por %p171, %p172
      %p174 = scmp.ne.s32.totalorder %s165, %s166
      %p175 = scmp.eq.s32.totalorder %s31, 0
      %p176 = por %p174, %p175
      %p177 = scmp.ne.s32.totalorder %s165, %s166
      %p178 = scmp.eq.s32.totalorder %s32, 1
      %p179 = por %p177, %p178
      %p181 = scmp.ne.s32.totalorder %s166, %s180
      %p182 = scmp.eq.s32.totalorder %s32, 0
      %p183 = por %p181, %p182
      %s185 = sadd.s32 %s184, 1
      %p188 = scmp.eq.s32.totalorder %s26, 1
      %p189 = scmp.ne.s32.totalorder %s184, %s186
      %p190 = scmp.eq.s32.totalorder %s26, 0
      %p191 = por %p189, %p190
      %p192 = scmp.ne.s32.totalorder %s184, %s186
      %p193 = scmp.eq.s32.totalorder %s31, 1
      %p194 = por %p192, %p193
      %p195 = scmp.ne.s32.totalorder %s186, %s187
      %p196 = scmp.eq.s32.totalorder %s31, 0
      %p197 = por %p195, %p196
      %p198 = scmp.ne.s32.totalorder %s186, %s187
      %p199 = scmp.eq.s32.totalorder %s32, 1
      %p200 = por %p198, %p199
      %p202 = scmp.ne.s32.totalorder %s187, %s201
      %p203 = scmp.eq.s32.totalorder %s32, 0
      %p204 = por %p202, %p203
      %s206 = sadd.s32 %s205, 1
      %p209 = scmp.eq.s32.totalorder %s26, 1
      %p210 = scmp.ne.s32.totalorder %s205, %s207
      %p211 = scmp.eq.s32.totalorder %s26, 0
      %p212 = por %p210, %p211
      %p213 = scmp.ne.s32.totalorder %s205, %s207
      %p214 = scmp.eq.s32.totalorder %s31, 1
      %p215 = por %p213, %p214
      %p216 = scmp.ne.s32.totalorder %s207, %s208
      %p217 = scmp.eq.s32.totalorder %s31, 0
      %p218 = por %p216, %p217
      %p219 = scmp.ne.s32.totalorder %s207, %s208
      %p220 = scmp.eq.s32.totalorder %s32, 1
      %p221 = por %p219, %p220
      %p223 = scmp.ne.s32.totalorder %s208, %s222
      %p224 = scmp.eq.s32.totalorder %s32, 0
      %p225 = por %p223, %p224
      %s226 = ssub.s32 %s33, %s45
      %s227 = ssub.s32 %s34, %s41
      %s228 = sor.u32 %s226, %s227
      %p229 = scmp.eq.s32.totalorder %s228, 0
      %s231 = sadd.s32 %s230, 1
      %s232 = scalar_select %p229, %s230, %s231
      %p235 = pneg %p229
      %p236 = scmp.eq.s32.totalorder %s26, 1
      %p237 = por %p235, %p236
      %p238 = scmp.ne.s32.totalorder %s230, %s233
      %p239 = scmp.eq.s32.totalorder %s26, 0
      %p240 = por %p238, %p239
      %p241 = scmp.ne.s32.totalorder %s230, %s233
      %p242 = scmp.eq.s32.totalorder %s31, 1
      %p243 = por %p241, %p242
      %p244 = scmp.ne.s32.totalorder %s233, %s234
      %p245 = scmp.eq.s32.totalorder %s31, 0
      %p246 = por %p244, %p245
      %p247 = scmp.ne.s32.totalorder %s233, %s234
      %p248 = scmp.eq.s32.totalorder %s32, 1
      %p249 = por %p247, %p248
      %p251 = scmp.ne.s32.totalorder %s234, %s250
      %p252 = scmp.eq.s32.totalorder %s32, 0
      %p253 = por %p251, %p252
      %p254 = scmp.le.s32.totalorder 1, %s26
      %p255 = scmp.lt.s32.totalorder %s26, 3
      %p256 = pnand %p254, %p255
      %p257 = pneg %p256
      // Predicated region
      $region9: #{tpu_custom_call.1} parent=5 // pred_check
        _
      $region10: #{tpu_custom_call.1} parent=5 // pred_check_branch
        %259 = sbr.rel (%p256) target = $region12
      $region11: #{tpu_custom_call.1} parent=5 // pred_region
        %s260 = ssub.s32 %s26, 1
        // Predicated region
        $region13: #{tpu_custom_call.1} parent=11 // pred_check
          %p261 = pneg %p113
        $region14: #{tpu_custom_call.1} parent=11 // pred_check_branch
          %263 = sbr.rel (%p261) target = $region16
        $region15: #{tpu_custom_call.1} parent=11 // pred_region
          %s265 = ssub.s32 512, 512
          %266 = vsyncadd [#allocation8], %s265
          %s267 = sshll.u32 [#allocation9], 4
          %s268 = int_to_ptr.vmem [resolvable:$true] %s267
          %273 = dma.hbm_to_vmem [thread:$0]  %s2, 512, %s268, [#allocation8], 128, 128, 8
        $region16: #{tpu_custom_call.1} parent=11 // pred_fallthru
          _
        // Predicated region
        $region17: #{tpu_custom_call.1} parent=11 // pred_check
          %p274 = pneg %p134
        $region18: #{tpu_custom_call.1} parent=11 // pred_check_branch
          %276 = sbr.rel (%p274) target = $region20
        $region19: #{tpu_custom_call.1} parent=11 // pred_region
          %s278 = ssub.s32 512, 512
          %279 = vsyncadd [#allocation11], %s278
          %s280 = sshll.u32 [#allocation10], 4
          %s281 = int_to_ptr.vmem [resolvable:$true] %s280
          %286 = dma.hbm_to_vmem [thread:$0]  %s3, 512, %s281, [#allocation11], 128, 128, 8
        $region20: #{tpu_custom_call.1} parent=11 // pred_fallthru
          _
        // Predicated region
        $region21: #{tpu_custom_call.1} parent=11 // pred_check
          %p287 = pneg %p155
        $region22: #{tpu_custom_call.1} parent=11 // pred_check_branch
          %289 = sbr.rel (%p287) target = $region24
        $region23: #{tpu_custom_call.1} parent=11 // pred_region
          %s291 = ssub.s32 512, 512
          %292 = vsyncadd [#allocation11], %s291
          %s293 = sshll.u32 [#allocation12], 4
          %s294 = int_to_ptr.vmem [resolvable:$true] %s293
          %299 = dma.hbm_to_vmem [thread:$0]  %s4, 512, %s294, [#allocation11], 128, 128, 8
        $region24: #{tpu_custom_call.1} parent=11 // pred_fallthru
          _
        // Predicated region
        $region25: #{tpu_custom_call.1} parent=11 // pred_check
          %p300 = pneg %p176
        $region26: #{tpu_custom_call.1} parent=11 // pred_check_branch
          %302 = sbr.rel (%p300) target = $region28
        $region27: #{tpu_custom_call.1} parent=11 // pred_region
          %s304 = ssub.s32 512, 512
          %305 = vsyncadd [#allocation14], %s304
          %s306 = sshll.u32 [#allocation13], 4
          %s307 = int_to_ptr.vmem [resolvable:$true] %s306
          %312 = dma.hbm_to_vmem [thread:$0]  %s5, 512, %s307, [#allocation14], 128, 128, 8
        $region28: #{tpu_custom_call.1} parent=11 // pred_fallthru
          _
        // Predicated region
        $region29: #{tpu_custom_call.1} parent=11 // pred_check
          %p313 = pneg %p197
        $region30: #{tpu_custom_call.1} parent=11 // pred_check_branch
          %315 = sbr.rel (%p313) target = $region32
        $region31: #{tpu_custom_call.1} parent=11 // pred_region
          %s317 = ssub.s32 512, 512
          %318 = vsyncadd [#allocation14], %s317
          %s319 = sshll.u32 [#allocation15], 4
          %s320 = int_to_ptr.vmem [resolvable:$true] %s319
          %325 = dma.hbm_to_vmem [thread:$0]  %s6, 512, %s320, [#allocation14], 128, 128, 8
        $region32: #{tpu_custom_call.1} parent=11 // pred_fallthru
          _
        // Predicated region
        $region33: #{tpu_custom_call.1} parent=11 // pred_check
          %p326 = pneg %p218
        $region34: #{tpu_custom_call.1} parent=11 // pred_check_branch
          %328 = sbr.rel (%p326) target = $region36
        $region35: #{tpu_custom_call.1} parent=11 // pred_region
          %s330 = ssub.s32 256, 256
          %331 = vsyncadd [#allocation17], %s330
          %s332 = sshll.u32 [#allocation16], 4
          %s333 = int_to_ptr.vmem [resolvable:$true] %s332
          %338 = dma.hbm_to_vmem [thread:$0]  %s7, 256, %s333, [#allocation17], 128, 128, 8
        $region36: #{tpu_custom_call.1} parent=11 // pred_fallthru
          _
      $region12: #{tpu_custom_call.1} parent=5 // pred_fallthru
        _
      %p339 = scmp.lt.s32.totalorder %s26, 2
      // Predicated region
      $region37: #{tpu_custom_call.1} parent=5 // pred_check
        %p340 = pneg %p339
      $region38: #{tpu_custom_call.1} parent=5 // pred_check_branch
        %342 = sbr.rel (%p340) target = $region40
      $region39: #{tpu_custom_call.1} parent=5 // pred_region
        // Predicated region
        $region41: #{tpu_custom_call.1} parent=39 // pred_check
          %p343 = pneg %p60
        $region42: #{tpu_custom_call.1} parent=39 // pred_check_branch
          %345 = sbr.rel (%p343) target = $region44
        $region43: #{tpu_custom_call.1} parent=39 // pred_region
          %s346 = sand.u32 %s50, 1
          %s347 = scalar_lea.sflag [#allocation5], %s346
          %s348 = sand.u32 %s50, 1
          %s349 = smul.addr %s348, 8
          %s350 = scalar_lea.vmem [#allocation4], %s349
          %s352 = ssub.s32 128, 128
          %353 = vsyncadd %s347, %s352
          %s354 = sadd.s32 %s34, %s33
          %s355 = smul.addr %s354, 128
          %s356 = scalar_lea.hbm %s0, %s355
          %s358 = sshll.u32 %s350, 4
          %s359 = int_to_ptr.vmem [resolvable:$true] %s358
          %361 = dma.hbm_to_vmem [thread:$0]  %s356, 128, %s359, %s347
        $region44: #{tpu_custom_call.1} parent=39 // pred_fallthru
          _
        // Predicated region
        $region45: #{tpu_custom_call.1} parent=39 // pred_check
          %p362 = pneg %p86
        $region46: #{tpu_custom_call.1} parent=39 // pred_check_branch
          %364 = sbr.rel (%p362) target = $region48
        $region47: #{tpu_custom_call.1} parent=39 // pred_region
          %s365 = sand.u32 %s26, 1
          %s366 = scalar_lea.sflag [#allocation8], %s365
          %s367 = sand.u32 %s76, 1
          %s368 = smul.addr %s367, 8
          %s369 = scalar_lea.vmem [#allocation7], %s368
          %s371 = ssub.s32 128, 128
          %372 = vsyncadd %s366, %s371
          %s373 = smul.addr %s33, 128
          %s374 = scalar_lea.hbm %s1, %s373
          %s376 = sshll.u32 %s369, 4
          %s377 = int_to_ptr.vmem [resolvable:$true] %s376
          %379 = dma.hbm_to_vmem [thread:$0]  %s374, 128, %s377, %s366
        $region48: #{tpu_custom_call.1} parent=39 // pred_fallthru
          _
      $region40: #{tpu_custom_call.1} parent=5 // pred_fallthru
        _
      %p380 = scmp.le.s32.totalorder 1, %s26
      %p381 = scmp.lt.s32.totalorder %s26, 3
      %p382 = pnand %p380, %p381
      %p383 = pneg %p382
      // Predicated region
      $region49: #{tpu_custom_call.1} parent=5 // pred_check
        _
      $region50: #{tpu_custom_call.1} parent=5 // pred_check_branch
        %385 = sbr.rel (%p382) target = $region52
      $region51: #{tpu_custom_call.1} parent=5 // pred_region
        %s386 = ssub.s32 %s26, 1
        %s387 = sand.u32 %s53, 1
        %s388 = scalar_lea.sflag [#allocation5], %s387
        %s389 = sand.u32 %s53, 1
        %s390 = smul.addr %s389, 8
        %s391 = scalar_lea.vmem [#allocation4], %s390
        // Predicated region
        $region53: #{tpu_custom_call.1} parent=51 // pred_check
          %p392 = pneg %p66
        $region54: #{tpu_custom_call.1} parent=51 // pred_check_branch
          %394 = sbr.rel (%p392) target = $region56
        $region55: #{tpu_custom_call.1} parent=51 // pred_region
          %395 = dma.done %s388, 128
        $region56: #{tpu_custom_call.1} parent=51 // pred_fallthru
          _
        %s396 = sand.u32 %s31, 1
        %s397 = scalar_lea.sflag [#allocation8], %s396
        %s398 = sand.u32 %s79, 1
        %s399 = smul.addr %s398, 8
        %s400 = scalar_lea.vmem [#allocation7], %s399
        // Predicated region
        $region57: #{tpu_custom_call.1} parent=51 // pred_check
          %p401 = pneg %p92
        $region58: #{tpu_custom_call.1} parent=51 // pred_check_branch
          %403 = sbr.rel (%p401) target = $region60
        $region59: #{tpu_custom_call.1} parent=51 // pred_region
          %404 = dma.done %s397, 128
        $region60: #{tpu_custom_call.1} parent=51 // pred_fallthru
          _
        // Predicated region
        $region61: #{tpu_custom_call.1} parent=51 // pred_check
          %p405 = pneg %p113
        $region62: #{tpu_custom_call.1} parent=51 // pred_check_branch
          %407 = sbr.rel (%p405) target = $region64
        $region63: #{tpu_custom_call.1} parent=51 // pred_region
          %408 = dma.done [#allocation8], 512
        $region64: #{tpu_custom_call.1} parent=51 // pred_fallthru
          _
        // Predicated region
        $region65: #{tpu_custom_call.1} parent=51 // pred_check
          %p409 = pneg %p134
        $region66: #{tpu_custom_call.1} parent=51 // pred_check_branch
          %411 = sbr.rel (%p409) target = $region68
        $region67: #{tpu_custom_call.1} parent=51 // pred_region
          %412 = dma.done [#allocation11], 512
        $region68: #{tpu_custom_call.1} parent=51 // pred_fallthru
          _
        // Predicated region
        $region69: #{tpu_custom_call.1} parent=51 // pred_check
          %p413 = pneg %p155
        $region70: #{tpu_custom_call.1} parent=51 // pred_check_branch
          %415 = sbr.rel (%p413) target = $region72
        $region71: #{tpu_custom_call.1} parent=51 // pred_region
          %416 = dma.done [#allocation11], 512
        $region72: #{tpu_custom_call.1} parent=51 // pred_fallthru
          _
        // Predicated region
        $region73: #{tpu_custom_call.1} parent=51 // pred_check
          %p417 = pneg %p176
        $region74: #{tpu_custom_call.1} parent=51 // pred_check_branch
          %419 = sbr.rel (%p417) target = $region76
        $region75: #{tpu_custom_call.1} parent=51 // pred_region
          %420 = dma.done [#allocation14], 512
        $region76: #{tpu_custom_call.1} parent=51 // pred_fallthru
          _
        // Predicated region
        $region77: #{tpu_custom_call.1} parent=51 // pred_check
          %p421 = pneg %p197
        $region78: #{tpu_custom_call.1} parent=51 // pred_check_branch
          %423 = sbr.rel (%p421) target = $region80
        $region79: #{tpu_custom_call.1} parent=51 // pred_region
          %424 = dma.done [#allocation14], 512
        $region80: #{tpu_custom_call.1} parent=51 // pred_fallthru
          _
        // Predicated region
        $region81: #{tpu_custom_call.1} parent=51 // pred_check
          %p425 = pneg %p218
        $region82: #{tpu_custom_call.1} parent=51 // pred_check_branch
          %427 = sbr.rel (%p425) target = $region84
        $region83: #{tpu_custom_call.1} parent=51 // pred_region
          %428 = dma.done [#allocation17], 256
        $region84: #{tpu_custom_call.1} parent=51 // pred_fallthru
          _
        %s429 = sand.u32 %s53, 1
        %s430 = scalar_lea.sflag [#allocation5], %s429
        %s431 = sand.u32 %s53, 1
        %s432 = smul.addr %s431, 8
        %s433 = scalar_lea.vmem [#allocation4], %s432
        %p434 = pneg %p66
        %p435 = pneg %p63
        %s436 = sand.u32 %s31, 1
        %s437 = scalar_lea.sflag [#allocation8], %s436
        %s438 = sand.u32 %s79, 1
        %s439 = smul.addr %s438, 8
        %s440 = scalar_lea.vmem [#allocation7], %s439
        %p441 = pneg %p92
        %p442 = pneg %p89
        %p443 = pneg %p113
        %p444 = pneg %p110
        %p445 = pneg %p134
        %p446 = pneg %p131
        %p447 = pneg %p155
        %p448 = pneg %p152
        %p449 = pneg %p176
        %p450 = pneg %p173
        %p451 = pneg %p197
        %p452 = pneg %p194
        %p453 = pneg %p218
        %p454 = pneg %p215
        %p455 = pneg %p246
        %p456 = pneg %p243
        %s457 = sand.u32 %s233, 1
        %s458 = scalar_lea.sflag [#allocation6], %s457
        %s459 = sand.u32 %s233, 1
        %s460 = smul.addr %s459, 8
        %s461 = scalar_lea.vmem [#allocation18], %s460
        %v462 = vld [vmem:[%s391] sm:$0xff]
        %v463 = vld [vmem:[#allocation16] sm:$0xff]
        %v464 = vld [vmem:[#allocation16 + $0x8] sm:$0x1]
        %p465 = scmp.eq.s32.totalorder %s36, 0
        // Predicated region
        $region85: #{tpu_custom_call.1} parent=51 // pred_check
          %p466 = pneg %p465
        $region86: #{tpu_custom_call.1} parent=51 // pred_check_branch
          %468 = sbr.rel (%p466) target = $region88
        $region87: #{tpu_custom_call.1} parent=51 // pred_region
          %v469 = vld [vmem:[%s400] sm:$0xff]
          %v470 = vld [vmem:[#allocation10] sm:$0xff]
          %v471 = vld [vmem:[#allocation10 + $0x8] sm:$0xff]
          %v472 = vld [vmem:[#allocation10 + $0x10] sm:$0xff]
          %v473 = vld [vmem:[#allocation10 + $0x18] sm:$0xff]
          %v474 = vlaneseq
          %v475 = vshrl.u32 %v474, 7
          %v476 = vsub.s32 1, %v475
          %v477 = vrot.slane %v463, %v476
          %vm478 = vcmask 261120
          %v480 = vsel %vm478, %v469, 0
          %482 = vmatprep.subr.mxu0 0.0
          %483 = vmatpush1.msra.mxu0 0.0
          %484 = vmatprep.subr.mxu0 0.0
          %485 = vmatpush1.msra.mxu0 0.0
          %486 = vmatprep.subr.mxu0 0.0
          %487 = vmatpush1.msra.mxu0 0.0
          %488 = vmatprep.subr.mxu0 0.0
          %489 = vmatpush1.msra.mxu0 0.0
          %490 = vmatprep.subr.mxu0 0.0
          %491 = vmatpush1.msra.mxu0 0.0
          %492 = vmatprep.subr.mxu0 0.0
          %493 = vmatpush1.msra.mxu0 0.0
          %494 = vmatprep.subr.mxu0 0.0
          %495 = vmatpush1.msra.mxu0 0.0
          %496 = vmatprep.subr.mxu0 0.0
          %497 = vmatpush1.msra.mxu0 0.0
          %498 = vmatprep.subr.mxu0 0.0
          %499 = vmatpush1.msra.mxu0 0.0
          %500 = vmatprep.subr.mxu0 0.0
          %501 = vmatpush1.msra.mxu0 0.0
          %502 = vmatprep.subr.mxu0 0.0
          %503 = vmatpush1.msra.mxu0 0.0
          %504 = vmatprep.subr.mxu0 0.0
          %505 = vmatpush1.msra.mxu0 0.0
          %506 = vmatprep.subr.mxu0 0.0
          %507 = vmatpush1.msra.mxu0 %v473
          %508 = vmatprep.subr.mxu0 0.0
          %509 = vmatpush1.msra.mxu0 %v472
          %510 = vmatprep.subr.mxu0 0.0
          %511 = vmatpush1.msra.mxu0 %v471
          %512 = vmatprep.subr.mxu0 0.0
          %513 = vmatpush1.msra.mxu0 %v470
          %514 = vmatprep.subr.mxu0 0.0
          %515 = vmatpush2.msra.mxu0 0.0
          %516 = vmatprep.subr.mxu0 0.0
          %517 = vmatpush2.msra.mxu0 0.0
          %518 = vmatprep.subr.mxu0 0.0
          %519 = vmatpush2.msra.mxu0 0.0
          %520 = vmatprep.subr.mxu0 0.0
          %521 = vmatpush2.msra.mxu0 0.0
          %522 = vmatprep.subr.mxu0 0.0
          %523 = vmatpush2.msra.mxu0 0.0
          %524 = vmatprep.subr.mxu0 0.0
          %525 = vmatpush2.msra.mxu0 0.0
          %526 = vmatprep.subr.mxu0 0.0
          %527 = vmatpush2.msra.mxu0 0.0
          %528 = vmatprep.subr.mxu0 0.0
          %529 = vmatpush2.msra.mxu0 0.0
          %530 = vmatprep.subr.mxu0 0.0
          %531 = vmatpush2.msra.mxu0 0.0
          %532 = vmatprep.subr.mxu0 0.0
          %533 = vmatpush2.msra.mxu0 0.0
          %534 = vmatprep.subr.mxu0 0.0
          %535 = vmatpush2.msra.mxu0 0.0
          %536 = vmatprep.subr.mxu0 0.0
          %537 = vmatpush2.msra.mxu0 0.0
          %538 = vmatprep.subr.mxu0 0.0
          %539 = vmatpush2.msra.mxu0 0.0
          %540 = vmatprep.subr.mxu0 0.0
          %541 = vmatpush2.msra.mxu0 0.0
          %542 = vmatprep.subr.mxu0 0.0
          %543 = vmatpush2.msra.mxu0 0.0
          %544 = vmatprep.subr.mxu0 0.0
          %545 = vmatpush2.msra.mxu0 0.0
          %546 = vmatprep.mubr.f32.mxu0 0.0
          %547 = vmatmul.mubr.f32.gmra.mxu0 %v480
          %v548 = vpop.f32.mrf.mxu0
          %v549 = vadd.f32 %v477, %v548
          %v550 = vpop.f32.mrf.mxu0
          %551 = vdwg.mxu0
          %v552 = vld [vmem:[#allocation12] sm:$0xff]
          %v553 = vld [vmem:[#allocation12 + $0x8] sm:$0xff]
          %v554 = vld [vmem:[#allocation12 + $0x10] sm:$0xff]
          %v555 = vld [vmem:[#allocation12 + $0x18] sm:$0xff]
          %v556 = vlaneseq
          %v557 = vshrl.u32 %v556, 7
          %v558 = vsub.s32 2, %v557
          %v559 = vrot.slane %v463, %v558
          %560 = vmatprep.subr.mxu0 0.0
          %561 = vmatpush1.msra.mxu0 0.0
          %562 = vmatprep.subr.mxu0 0.0
          %563 = vmatpush1.msra.mxu0 0.0
          %564 = vmatprep.subr.mxu0 0.0
          %565 = vmatpush1.msra.mxu0 0.0
          %566 = vmatprep.subr.mxu0 0.0
          %567 = vmatpush1.msra.mxu0 0.0
          %568 = vmatprep.subr.mxu0 0.0
          %569 = vmatpush1.msra.mxu0 0.0
          %570 = vmatprep.subr.mxu0 0.0
          %571 = vmatpush1.msra.mxu0 0.0
          %572 = vmatprep.subr.mxu0 0.0
          %573 = vmatpush1.msra.mxu0 0.0
          %574 = vmatprep.subr.mxu0 0.0
          %575 = vmatpush1.msra.mxu0 0.0
          %576 = vmatprep.subr.mxu0 0.0
          %577 = vmatpush1.msra.mxu0 0.0
          %578 = vmatprep.subr.mxu0 0.0
          %579 = vmatpush1.msra.mxu0 0.0
          %580 = vmatprep.subr.mxu0 0.0
          %581 = vmatpush1.msra.mxu0 0.0
          %582 = vmatprep.subr.mxu0 0.0
          %583 = vmatpush1.msra.mxu0 0.0
          %584 = vmatprep.subr.mxu0 0.0
          %585 = vmatpush1.msra.mxu0 %v555
          %586 = vmatprep.subr.mxu0 0.0
          %587 = vmatpush1.msra.mxu0 %v554
          %588 = vmatprep.subr.mxu0 0.0
          %589 = vmatpush1.msra.mxu0 %v553
          %590 = vmatprep.subr.mxu0 0.0
          %591 = vmatpush1.msra.mxu0 %v552
          %592 = vmatprep.subr.mxu0 0.0
          %593 = vmatpush2.msra.mxu0 0.0
          %594 = vmatprep.subr.mxu0 0.0
          %595 = vmatpush2.msra.mxu0 0.0
          %596 = vmatprep.subr.mxu0 0.0
          %597 = vmatpush2.msra.mxu0 0.0
          %598 = vmatprep.subr.mxu0 0.0
          %599 = vmatpush2.msra.mxu0 0.0
          %600 = vmatprep.subr.mxu0 0.0
          %601 = vmatpush2.msra.mxu0 0.0
          %602 = vmatprep.subr.mxu0 0.0
          %603 = vmatpush2.msra.mxu0 0.0
          %604 = vmatprep.subr.mxu0 0.0
          %605 = vmatpush2.msra.mxu0 0.0
          %606 = vmatprep.subr.mxu0 0.0
          %607 = vmatpush2.msra.mxu0 0.0
          %608 = vmatprep.subr.mxu0 0.0
          %609 = vmatpush2.msra.mxu0 0.0
          %610 = vmatprep.subr.mxu0 0.0
          %611 = vmatpush2.msra.mxu0 0.0
          %612 = vmatprep.subr.mxu0 0.0
          %613 = vmatpush2.msra.mxu0 0.0
          %614 = vmatprep.subr.mxu0 0.0
          %615 = vmatpush2.msra.mxu0 0.0
          %616 = vmatprep.subr.mxu0 0.0
          %617 = vmatpush2.msra.mxu0 0.0
          %618 = vmatprep.subr.mxu0 0.0
          %619 = vmatpush2.msra.mxu0 0.0
          %620 = vmatprep.subr.mxu0 0.0
          %621 = vmatpush2.msra.mxu0 0.0
          %622 = vmatprep.subr.mxu0 0.0
          %623 = vmatpush2.msra.mxu0 0.0
          %624 = vmatprep.mubr.f32.mxu0 0.0
          %625 = vmatmul.mubr.f32.gmra.mxu0 %v480
          %v626 = vpop.f32.mrf.mxu0
          %v627 = vadd.f32 %v559, %v626
          %v628 = vpop.f32.mrf.mxu0
          %629 = vdwg.mxu0
          %631 = vrot.lane.b32.xlu0 %v549, 120
          %v632 = vpop.permute.xlu0 %631
          %634 = vrot.lane.b32.xlu0 %v549, 112
          %v635 = vpop.permute.xlu0 %634
          %637 = vrot.lane.b32.xlu0 %v549, 104
          %v638 = vpop.permute.xlu0 %637
          %v640 = vcombine.low %v549, %v635
          %v641 = vcombine.high %v549, %v635
          %v643 = vunpack.c.l.s4 1983009808
          %v644 = vunpack.c.0.s8 %v643
          %v645 = vlaneseq
          %v646 = vshrl.u32 %v645, 7
          %v647 = vsub.s32 %v644, %v646
          %v648 = vrot.slane %v640, %v647
          %v650 = vunpack.c.l.s4 1983009808
          %v651 = vunpack.c.0.s8 %v650
          %v652 = vlaneseq
          %v653 = vshrl.u32 %v652, 7
          %v654 = vsub.s32 %v651, %v653
          %v655 = vrot.slane %v641, %v654
          %v656 = vcombine.low %v632, %v638
          %v657 = vcombine.high %v632, %v638
          %v659 = vunpack.c.l.s4 1983009808
          %v660 = vunpack.c.0.s8 %v659
          %v661 = vlaneseq
          %v662 = vshrl.u32 %v661, 7
          %v663 = vsub.s32 %v660, %v662
          %v664 = vrot.slane %v656, %v663
          %v666 = vunpack.c.l.s4 1983009808
          %v667 = vunpack.c.0.s8 %v666
          %v668 = vlaneseq
          %v669 = vshrl.u32 %v668, 7
          %v670 = vsub.s32 %v667, %v669
          %v671 = vrot.slane %v657, %v670
          %v672 = vcombine.low %v648, %v664
          %v673 = vcombine.high %v648, %v664
          %v675 = vunpack.c.l.s4 1934713408
          %v676 = vunpack.c.0.s8 %v675
          %v677 = vlaneseq
          %v678 = vshrl.u32 %v677, 7
          %v679 = vsub.s32 %v676, %v678
          %v680 = vrot.slane %v672, %v679
          %v682 = vunpack.c.l.s4 1934713408
          %v683 = vunpack.c.0.s8 %v682
          %v684 = vlaneseq
          %v685 = vshrl.u32 %v684, 7
          %v686 = vsub.s32 %v683, %v685
          %v687 = vrot.slane %v673, %v686
          %v688 = vcombine.low %v655, %v671
          %v689 = vcombine.high %v655, %v671
          %v691 = vunpack.c.l.s4 1934713408
          %v692 = vunpack.c.0.s8 %v691
          %v693 = vlaneseq
          %v694 = vshrl.u32 %v693, 7
          %v695 = vsub.s32 %v692, %v694
          %v696 = vrot.slane %v688, %v695
          %v698 = vunpack.c.l.s4 1934713408
          %v699 = vunpack.c.0.s8 %v698
          %v700 = vlaneseq
          %v701 = vshrl.u32 %v700, 7
          %v702 = vsub.s32 %v699, %v701
          %v703 = vrot.slane %v689, %v702
          %v704 = vcombine.high %v680, 0.0
          %v705 = vcombine.high %v687, 0.0
          %v706 = vcombine.high %v696, 0.0
          %v707 = vcombine.high %v703, 0.0
          %v708 = vcombine.low %v680, %v687
          %v710 = vunpack.c.l.s4 1983009808
          %v711 = vunpack.c.0.s8 %v710
          %v712 = vlaneseq
          %v713 = vshrl.u32 %v712, 7
          %v714 = vsub.s32 %v711, %v713
          %v715 = vrot.slane %v708, %v714
          %v716 = vcombine.low %v704, %v705
          %v718 = vunpack.c.l.s4 1983009808
          %v719 = vunpack.c.0.s8 %v718
          %v720 = vlaneseq
          %v721 = vshrl.u32 %v720, 7
          %v722 = vsub.s32 %v719, %v721
          %v723 = vrot.slane %v716, %v722
          %v724 = vcombine.low %v696, %v703
          %v726 = vunpack.c.l.s4 1983009808
          %v727 = vunpack.c.0.s8 %v726
          %v728 = vlaneseq
          %v729 = vshrl.u32 %v728, 7
          %v730 = vsub.s32 %v727, %v729
          %v731 = vrot.slane %v724, %v730
          %v732 = vcombine.low %v706, %v707
          %v734 = vunpack.c.l.s4 1983009808
          %v735 = vunpack.c.0.s8 %v734
          %v736 = vlaneseq
          %v737 = vshrl.u32 %v736, 7
          %v738 = vsub.s32 %v735, %v737
          %v739 = vrot.slane %v732, %v738
          %v740 = vcombine.low %v715, %v723
          %v741 = vcombine.high %v715, %v723
          %v743 = vunpack.c.l.s4 1934713408
          %v744 = vunpack.c.0.s8 %v743
          %v745 = vlaneseq
          %v746 = vshrl.u32 %v745, 7
          %v747 = vsub.s32 %v744, %v746
          %v748 = vrot.slane %v740, %v747
          %v750 = vunpack.c.l.s4 1934713408
          %v751 = vunpack.c.0.s8 %v750
          %v752 = vlaneseq
          %v753 = vshrl.u32 %v752, 7
          %v754 = vsub.s32 %v751, %v753
          %v755 = vrot.slane %v741, %v754
          %v756 = vcombine.low %v731, %v739
          %v757 = vcombine.high %v731, %v739
          %v759 = vunpack.c.l.s4 1934713408
          %v760 = vunpack.c.0.s8 %v759
          %v761 = vlaneseq
          %v762 = vshrl.u32 %v761, 7
          %v763 = vsub.s32 %v760, %v762
          %v764 = vrot.slane %v756, %v763
          %v766 = vunpack.c.l.s4 1934713408
          %v767 = vunpack.c.0.s8 %v766
          %v768 = vlaneseq
          %v769 = vshrl.u32 %v768, 7
          %v770 = vsub.s32 %v767, %v769
          %v771 = vrot.slane %v757, %v770
          %v772 = vcombine.low %v748, %v764
          %v773 = vcombine.high %v748, %v764
          %v774 = vcombine.low %v755, %v771
          %v775 = vcombine.high %v755, %v771
          %vm776 = vcmask 64512
          %777 = vst.msk [vmem:[#allocation2] sm:$0xff] %vm776, %v772
          %778 = vst.msk [vmem:[#allocation2 + $0x8] sm:$0xff] %vm776, %v773
          %779 = vst.msk [vmem:[#allocation2 + $0x10] sm:$0xff] %vm776, %v774
          %780 = vst.msk [vmem:[#allocation2 + $0x18] sm:$0xff] %vm776, %v775
          %782 = vrot.lane.b32.xlu0 %v627, 120
          %v783 = vpop.permute.xlu0 %782
          %785 = vrot.lane.b32.xlu0 %v627, 112
          %v786 = vpop.permute.xlu0 %785
          %788 = vrot.lane.b32.xlu0 %v627, 104
          %v789 = vpop.permute.xlu0 %788
          %v791 = vcombine.low %v627, %v786
          %v792 = vcombine.high %v627, %v786
          %v794 = vunpack.c.l.s4 1983009808
          %v795 = vunpack.c.0.s8 %v794
          %v796 = vlaneseq
          %v797 = vshrl.u32 %v796, 7
          %v798 = vsub.s32 %v795, %v797
          %v799 = vrot.slane %v791, %v798
          %v801 = vunpack.c.l.s4 1983009808
          %v802 = vunpack.c.0.s8 %v801
          %v803 = vlaneseq
          %v804 = vshrl.u32 %v803, 7
          %v805 = vsub.s32 %v802, %v804
          %v806 = vrot.slane %v792, %v805
          %v807 = vcombine.low %v783, %v789
          %v808 = vcombine.high %v783, %v789
          %v810 = vunpack.c.l.s4 1983009808
          %v811 = vunpack.c.0.s8 %v810
          %v812 = vlaneseq
          %v813 = vshrl.u32 %v812, 7
          %v814 = vsub.s32 %v811, %v813
          %v815 = vrot.slane %v807, %v814
          %v817 = vunpack.c.l.s4 1983009808
          %v818 = vunpack.c.0.s8 %v817
          %v819 = vlaneseq
          %v820 = vshrl.u32 %v819, 7
          %v821 = vsub.s32 %v818, %v820
          %v822 = vrot.slane %v808, %v821
          %v823 = vcombine.low %v799, %v815
          %v824 = vcombine.high %v799, %v815
          %v826 = vunpack.c.l.s4 1934713408
          %v827 = vunpack.c.0.s8 %v826
          %v828 = vlaneseq
          %v829 = vshrl.u32 %v828, 7
          %v830 = vsub.s32 %v827, %v829
          %v831 = vrot.slane %v823, %v830
          %v833 = vunpack.c.l.s4 1934713408
          %v834 = vunpack.c.0.s8 %v833
          %v835 = vlaneseq
          %v836 = vshrl.u32 %v835, 7
          %v837 = vsub.s32 %v834, %v836
          %v838 = vrot.slane %v824, %v837
          %v839 = vcombine.low %v806, %v822
          %v840 = vcombine.high %v806, %v822
          %v842 = vunpack.c.l.s4 1934713408
          %v843 = vunpack.c.0.s8 %v842
          %v844 = vlaneseq
          %v845 = vshrl.u32 %v844, 7
          %v846 = vsub.s32 %v843, %v845
          %v847 = vrot.slane %v839, %v846
          %v849 = vunpack.c.l.s4 1934713408
          %v850 = vunpack.c.0.s8 %v849
          %v851 = vlaneseq
          %v852 = vshrl.u32 %v851, 7
          %v853 = vsub.s32 %v850, %v852
          %v854 = vrot.slane %v840, %v853
          %v855 = vcombine.high %v831, 0.0
          %v856 = vcombine.high %v838, 0.0
          %v857 = vcombine.high %v847, 0.0
          %v858 = vcombine.high %v854, 0.0
          %v859 = vcombine.low %v831, %v838
          %v861 = vunpack.c.l.s4 1983009808
          %v862 = vunpack.c.0.s8 %v861
          %v863 = vlaneseq
          %v864 = vshrl.u32 %v863, 7
          %v865 = vsub.s32 %v862, %v864
          %v866 = vrot.slane %v859, %v865
          %v867 = vcombine.low %v855, %v856
          %v869 = vunpack.c.l.s4 1983009808
          %v870 = vunpack.c.0.s8 %v869
          %v871 = vlaneseq
          %v872 = vshrl.u32 %v871, 7
          %v873 = vsub.s32 %v870, %v872
          %v874 = vrot.slane %v867, %v873
          %v875 = vcombine.low %v847, %v854
          %v877 = vunpack.c.l.s4 1983009808
          %v878 = vunpack.c.0.s8 %v877
          %v879 = vlaneseq
          %v880 = vshrl.u32 %v879, 7
          %v881 = vsub.s32 %v878, %v880
          %v882 = vrot.slane %v875, %v881
          %v883 = vcombine.low %v857, %v858
          %v885 = vunpack.c.l.s4 1983009808
          %v886 = vunpack.c.0.s8 %v885
          %v887 = vlaneseq
          %v888 = vshrl.u32 %v887, 7
          %v889 = vsub.s32 %v886, %v888
          %v890 = vrot.slane %v883, %v889
          %v891 = vcombine.low %v866, %v874
          %v892 = vcombine.high %v866, %v874
          %v894 = vunpack.c.l.s4 1934713408
          %v895 = vunpack.c.0.s8 %v894
          %v896 = vlaneseq
          %v897 = vshrl.u32 %v896, 7
          %v898 = vsub.s32 %v895, %v897
          %v899 = vrot.slane %v891, %v898
          %v901 = vunpack.c.l.s4 1934713408
          %v902 = vunpack.c.0.s8 %v901
          %v903 = vlaneseq
          %v904 = vshrl.u32 %v903, 7
          %v905 = vsub.s32 %v902, %v904
          %v906 = vrot.slane %v892, %v905
          %v907 = vcombine.low %v882, %v890
          %v908 = vcombine.high %v882, %v890
          %v910 = vunpack.c.l.s4 1934713408
          %v911 = vunpack.c.0.s8 %v910
          %v912 = vlaneseq
          %v913 = vshrl.u32 %v912, 7
          %v914 = vsub.s32 %v911, %v913
          %v915 = vrot.slane %v907, %v914
          %v917 = vunpack.c.l.s4 1934713408
          %v918 = vunpack.c.0.s8 %v917
          %v919 = vlaneseq
          %v920 = vshrl.u32 %v919, 7
          %v921 = vsub.s32 %v918, %v920
          %v922 = vrot.slane %v908, %v921
          %v923 = vcombine.low %v899, %v915
          %v924 = vcombine.high %v899, %v915
          %v925 = vcombine.low %v906, %v922
          %v926 = vcombine.high %v906, %v922
          %927 = vst.msk [vmem:[#allocation3] sm:$0xff] %vm776, %v923
          %928 = vst.msk [vmem:[#allocation3 + $0x8] sm:$0xff] %vm776, %v924
          %929 = vst.msk [vmem:[#allocation3 + $0x10] sm:$0xff] %vm776, %v925
          %930 = vst.msk [vmem:[#allocation3 + $0x18] sm:$0xff] %vm776, %v926
        $region88: #{tpu_custom_call.1} parent=51 // pred_fallthru
          _
        %v931 = vld [vmem:[#allocation9] sm:$0xff]
        %v932 = vld [vmem:[#allocation9 + $0x8] sm:$0xff]
        %v933 = vld [vmem:[#allocation9 + $0x10] sm:$0xff]
        %v934 = vld [vmem:[#allocation9 + $0x18] sm:$0xff]
        %v935 = vlaneseq
        %v936 = vshrl.u32 %v935, 7
        %v937 = vsub.s32 0, %v936
        %v938 = vrot.slane %v463, %v937
        %vm939 = vcmask 261120
        %v941 = vsel %vm939, %v462, 0
        %943 = vmatprep.subr.mxu0 0.0
        %944 = vmatpush1.msra.mxu0 0.0
        %945 = vmatprep.subr.mxu0 0.0
        %946 = vmatpush1.msra.mxu0 0.0
        %947 = vmatprep.subr.mxu0 0.0
        %948 = vmatpush1.msra.mxu0 0.0
        %949 = vmatprep.subr.mxu0 0.0
        %950 = vmatpush1.msra.mxu0 0.0
        %951 = vmatprep.subr.mxu0 0.0
        %952 = vmatpush1.msra.mxu0 0.0
        %953 = vmatprep.subr.mxu0 0.0
        %954 = vmatpush1.msra.mxu0 0.0
        %955 = vmatprep.subr.mxu0 0.0
        %956 = vmatpush1.msra.mxu0 0.0
        %957 = vmatprep.subr.mxu0 0.0
        %958 = vmatpush1.msra.mxu0 0.0
        %959 = vmatprep.subr.mxu0 0.0
        %960 = vmatpush1.msra.mxu0 0.0
        %961 = vmatprep.subr.mxu0 0.0
        %962 = vmatpush1.msra.mxu0 0.0
        %963 = vmatprep.subr.mxu0 0.0
        %964 = vmatpush1.msra.mxu0 0.0
        %965 = vmatprep.subr.mxu0 0.0
        %966 = vmatpush1.msra.mxu0 0.0
        %967 = vmatprep.subr.mxu0 0.0
        %968 = vmatpush1.msra.mxu0 %v934
        %969 = vmatprep.subr.mxu0 0.0
        %970 = vmatpush1.msra.mxu0 %v933
        %971 = vmatprep.subr.mxu0 0.0
        %972 = vmatpush1.msra.mxu0 %v932
        %973 = vmatprep.subr.mxu0 0.0
        %974 = vmatpush1.msra.mxu0 %v931
        %975 = vmatprep.subr.mxu0 0.0
        %976 = vmatpush2.msra.mxu0 0.0
        %977 = vmatprep.subr.mxu0 0.0
        %978 = vmatpush2.msra.mxu0 0.0
        %979 = vmatprep.subr.mxu0 0.0
        %980 = vmatpush2.msra.mxu0 0.0
        %981 = vmatprep.subr.mxu0 0.0
        %982 = vmatpush2.msra.mxu0 0.0
        %983 = vmatprep.subr.mxu0 0.0
        %984 = vmatpush2.msra.mxu0 0.0
        %985 = vmatprep.subr.mxu0 0.0
        %986 = vmatpush2.msra.mxu0 0.0
        %987 = vmatprep.subr.mxu0 0.0
        %988 = vmatpush2.msra.mxu0 0.0
        %989 = vmatprep.subr.mxu0 0.0
        %990 = vmatpush2.msra.mxu0 0.0
        %991 = vmatprep.subr.mxu0 0.0
        %992 = vmatpush2.msra.mxu0 0.0
        %993 = vmatprep.subr.mxu0 0.0
        %994 = vmatpush2.msra.mxu0 0.0
        %995 = vmatprep.subr.mxu0 0.0
        %996 = vmatpush2.msra.mxu0 0.0
        %997 = vmatprep.subr.mxu0 0.0
        %998 = vmatpush2.msra.mxu0 0.0
        %999 = vmatprep.subr.mxu0 0.0
        %1000 = vmatpush2.msra.mxu0 0.0
        %1001 = vmatprep.subr.mxu0 0.0
        %1002 = vmatpush2.msra.mxu0 0.0
        %1003 = vmatprep.subr.mxu0 0.0
        %1004 = vmatpush2.msra.mxu0 0.0
        %1005 = vmatprep.subr.mxu0 0.0
        %1006 = vmatpush2.msra.mxu0 0.0
        %1007 = vmatprep.mubr.f32.mxu0 0.0
        %1008 = vmatmul.mubr.f32.gmra.mxu0 %v941
        %v1009 = vpop.f32.mrf.mxu0
        %v1010 = vadd.f32 %v938, %v1009
        %v1011 = vpop.f32.mrf.mxu0
        %1012 = vdwg.mxu0
        %1014 = vrot.lane.b32.xlu0 %v1010, 120
        %v1015 = vpop.permute.xlu0 %1014
        %1017 = vrot.lane.b32.xlu0 %v1010, 112
        %v1018 = vpop.permute.xlu0 %1017
        %1020 = vrot.lane.b32.xlu0 %v1010, 104
        %v1021 = vpop.permute.xlu0 %1020
        %v1023 = vcombine.low %v1010, %v1018
        %v1024 = vcombine.high %v1010, %v1018
        %v1026 = vunpack.c.l.s4 1983009808
        %v1027 = vunpack.c.0.s8 %v1026
        %v1028 = vlaneseq
        %v1029 = vshrl.u32 %v1028, 7
        %v1030 = vsub.s32 %v1027, %v1029
        %v1031 = vrot.slane %v1023, %v1030
        %v1033 = vunpack.c.l.s4 1983009808
        %v1034 = vunpack.c.0.s8 %v1033
        %v1035 = vlaneseq
        %v1036 = vshrl.u32 %v1035, 7
        %v1037 = vsub.s32 %v1034, %v1036
        %v1038 = vrot.slane %v1024, %v1037
        %v1039 = vcombine.low %v1015, %v1021
        %v1040 = vcombine.high %v1015, %v1021
        %v1042 = vunpack.c.l.s4 1983009808
        %v1043 = vunpack.c.0.s8 %v1042
        %v1044 = vlaneseq
        %v1045 = vshrl.u32 %v1044, 7
        %v1046 = vsub.s32 %v1043, %v1045
        %v1047 = vrot.slane %v1039, %v1046
        %v1049 = vunpack.c.l.s4 1983009808
        %v1050 = vunpack.c.0.s8 %v1049
        %v1051 = vlaneseq
        %v1052 = vshrl.u32 %v1051, 7
        %v1053 = vsub.s32 %v1050, %v1052
        %v1054 = vrot.slane %v1040, %v1053
        %v1055 = vcombine.low %v1031, %v1047
        %v1056 = vcombine.high %v1031, %v1047
        %v1058 = vunpack.c.l.s4 1934713408
        %v1059 = vunpack.c.0.s8 %v1058
        %v1060 = vlaneseq
        %v1061 = vshrl.u32 %v1060, 7
        %v1062 = vsub.s32 %v1059, %v1061
        %v1063 = vrot.slane %v1055, %v1062
        %v1065 = vunpack.c.l.s4 1934713408
        %v1066 = vunpack.c.0.s8 %v1065
        %v1067 = vlaneseq
        %v1068 = vshrl.u32 %v1067, 7
        %v1069 = vsub.s32 %v1066, %v1068
        %v1070 = vrot.slane %v1056, %v1069
        %v1071 = vcombine.low %v1038, %v1054
        %v1072 = vcombine.high %v1038, %v1054
        %v1074 = vunpack.c.l.s4 1934713408
        %v1075 = vunpack.c.0.s8 %v1074
        %v1076 = vlaneseq
        %v1077 = vshrl.u32 %v1076, 7
        %v1078 = vsub.s32 %v1075, %v1077
        %v1079 = vrot.slane %v1071, %v1078
        %v1081 = vunpack.c.l.s4 1934713408
        %v1082 = vunpack.c.0.s8 %v1081
        %v1083 = vlaneseq
        %v1084 = vshrl.u32 %v1083, 7
        %v1085 = vsub.s32 %v1082, %v1084
        %v1086 = vrot.slane %v1072, %v1085
        %v1087 = vcombine.high %v1063, 0.0
        %v1088 = vcombine.high %v1070, 0.0
        %v1089 = vcombine.high %v1079, 0.0
        %v1090 = vcombine.high %v1086, 0.0
        %v1091 = vcombine.low %v1063, %v1070
        %v1093 = vunpack.c.l.s4 1983009808
        %v1094 = vunpack.c.0.s8 %v1093
        %v1095 = vlaneseq
        %v1096 = vshrl.u32 %v1095, 7
        %v1097 = vsub.s32 %v1094, %v1096
        %v1098 = vrot.slane %v1091, %v1097
        %v1099 = vcombine.low %v1087, %v1088
        %v1101 = vunpack.c.l.s4 1983009808
        %v1102 = vunpack.c.0.s8 %v1101
        %v1103 = vlaneseq
        %v1104 = vshrl.u32 %v1103, 7
        %v1105 = vsub.s32 %v1102, %v1104
        %v1106 = vrot.slane %v1099, %v1105
        %v1107 = vcombine.low %v1079, %v1086
        %v1109 = vunpack.c.l.s4 1983009808
        %v1110 = vunpack.c.0.s8 %v1109
        %v1111 = vlaneseq
        %v1112 = vshrl.u32 %v1111, 7
        %v1113 = vsub.s32 %v1110, %v1112
        %v1114 = vrot.slane %v1107, %v1113
        %v1115 = vcombine.low %v1089, %v1090
        %v1117 = vunpack.c.l.s4 1983009808
        %v1118 = vunpack.c.0.s8 %v1117
        %v1119 = vlaneseq
        %v1120 = vshrl.u32 %v1119, 7
        %v1121 = vsub.s32 %v1118, %v1120
        %v1122 = vrot.slane %v1115, %v1121
        %v1123 = vcombine.low %v1098, %v1106
        %v1124 = vcombine.high %v1098, %v1106
        %v1126 = vunpack.c.l.s4 1934713408
        %v1127 = vunpack.c.0.s8 %v1126
        %v1128 = vlaneseq
        %v1129 = vshrl.u32 %v1128, 7
        %v1130 = vsub.s32 %v1127, %v1129
        %v1131 = vrot.slane %v1123, %v1130
        %v1133 = vunpack.c.l.s4 1934713408
        %v1134 = vunpack.c.0.s8 %v1133
        %v1135 = vlaneseq
        %v1136 = vshrl.u32 %v1135, 7
        %v1137 = vsub.s32 %v1134, %v1136
        %v1138 = vrot.slane %v1124, %v1137
        %v1139 = vcombine.low %v1114, %v1122
        %v1140 = vcombine.high %v1114, %v1122
        %v1142 = vunpack.c.l.s4 1934713408
        %v1143 = vunpack.c.0.s8 %v1142
        %v1144 = vlaneseq
        %v1145 = vshrl.u32 %v1144, 7
        %v1146 = vsub.s32 %v1143, %v1145
        %v1147 = vrot.slane %v1139, %v1146
        %v1149 = vunpack.c.l.s4 1934713408
        %v1150 = vunpack.c.0.s8 %v1149
        %v1151 = vlaneseq
        %v1152 = vshrl.u32 %v1151, 7
        %v1153 = vsub.s32 %v1150, %v1152
        %v1154 = vrot.slane %v1140, %v1153
        %v1155 = vcombine.low %v1131, %v1147
        %v1156 = vcombine.high %v1131, %v1147
        %v1157 = vcombine.low %v1138, %v1154
        %v1158 = vcombine.high %v1138, %v1154
        %v1159 = vld [vmem:[#allocation2] sm:$0xff]
        %v1160 = vld [vmem:[#allocation2 + $0x8] sm:$0xff]
        %v1161 = vld [vmem:[#allocation2 + $0x10] sm:$0xff]
        %v1162 = vld [vmem:[#allocation2 + $0x18] sm:$0xff]
        %v1163 = vld [vmem:[#allocation3] sm:$0xff]
        %v1164 = vld [vmem:[#allocation3 + $0x8] sm:$0xff]
        %v1165 = vld [vmem:[#allocation3 + $0x10] sm:$0xff]
        %v1166 = vld [vmem:[#allocation3 + $0x18] sm:$0xff]
        %vm1167 = vcmask 64512
        %v1169 = vsel %vm1167, %v1155, 0
        %v1172 = vsel %vm1167, %v1159, 0
        %1174 = vmatprep.subr.mxu0 0.0
        %1175 = vmatpush1.xpose.msra.mxu0 0.0
        %1176 = vmatprep.subr.mxu0 0.0
        %1177 = vmatpush1.xpose.msra.mxu0 0.0
        %1178 = vmatprep.subr.mxu0 0.0
        %1179 = vmatpush1.xpose.msra.mxu0 0.0
        %1180 = vmatprep.subr.mxu0 0.0
        %1181 = vmatpush1.xpose.msra.mxu0 0.0
        %1182 = vmatprep.subr.mxu0 0.0
        %1183 = vmatpush1.xpose.msra.mxu0 0.0
        %1184 = vmatprep.subr.mxu0 0.0
        %1185 = vmatpush1.xpose.msra.mxu0 0.0
        %1186 = vmatprep.subr.mxu0 0.0
        %1187 = vmatpush1.xpose.msra.mxu0 0.0
        %1188 = vmatprep.subr.mxu0 0.0
        %1189 = vmatpush1.xpose.msra.mxu0 0.0
        %1190 = vmatprep.subr.mxu0 0.0
        %1191 = vmatpush1.xpose.msra.mxu0 0.0
        %1192 = vmatprep.subr.mxu0 0.0
        %1193 = vmatpush1.xpose.msra.mxu0 0.0
        %1194 = vmatprep.subr.mxu0 0.0
        %1195 = vmatpush1.xpose.msra.mxu0 0.0
        %1196 = vmatprep.subr.mxu0 0.0
        %1197 = vmatpush1.xpose.msra.mxu0 0.0
        %1198 = vmatprep.subr.mxu0 0.0
        %1199 = vmatpush1.xpose.msra.mxu0 0.0
        %1200 = vmatprep.subr.mxu0 0.0
        %1201 = vmatpush1.xpose.msra.mxu0 0.0
        %1202 = vmatprep.subr.mxu0 0.0
        %1203 = vmatpush1.xpose.msra.mxu0 0.0
        %1204 = vmatprep.subr.mxu0 0.0
        %1205 = vmatpush1.xpose.msra.mxu0 %v1172
        %1206 = vmatprep.subr.mxu0 0.0
        %1207 = vmatpush2.xpose.msra.mxu0 0.0
        %1208 = vmatprep.subr.mxu0 0.0
        %1209 = vmatpush2.xpose.msra.mxu0 0.0
        %1210 = vmatprep.subr.mxu0 0.0
        %1211 = vmatpush2.xpose.msra.mxu0 0.0
        %1212 = vmatprep.subr.mxu0 0.0
        %1213 = vmatpush2.xpose.msra.mxu0 0.0
        %1214 = vmatprep.subr.mxu0 0.0
        %1215 = vmatpush2.xpose.msra.mxu0 0.0
        %1216 = vmatprep.subr.mxu0 0.0
        %1217 = vmatpush2.xpose.msra.mxu0 0.0
        %1218 = vmatprep.subr.mxu0 0.0
        %1219 = vmatpush2.xpose.msra.mxu0 0.0
        %1220 = vmatprep.subr.mxu0 0.0
        %1221 = vmatpush2.xpose.msra.mxu0 0.0
        %1222 = vmatprep.subr.mxu0 0.0
        %1223 = vmatpush2.xpose.msra.mxu0 0.0
        %1224 = vmatprep.subr.mxu0 0.0
        %1225 = vmatpush2.xpose.msra.mxu0 0.0
        %1226 = vmatprep.subr.mxu0 0.0
        %1227 = vmatpush2.xpose.msra.mxu0 0.0
        %1228 = vmatprep.subr.mxu0 0.0
        %1229 = vmatpush2.xpose.msra.mxu0 0.0
        %1230 = vmatprep.subr.mxu0 0.0
        %1231 = vmatpush2.xpose.msra.mxu0 0.0
        %1232 = vmatprep.subr.mxu0 0.0
        %1233 = vmatpush2.xpose.msra.mxu0 0.0
        %1234 = vmatprep.subr.mxu0 0.0
        %1235 = vmatpush2.xpose.msra.mxu0 0.0
        %1236 = vmatprep.subr.mxu0 0.0
        %1237 = vmatpush2.xpose.msra.mxu0 0.0
        %1238 = vmatprep.mubr.f32.mxu0 0.0
        %1239 = vmatmul.mubr.f32.gmra.mxu0 %v1169
        %v1240 = vpop.f32.mrf.mxu0
        %v1241 = vadd.f32 0.0, %v1240
        %v1242 = vpop.f32.mrf.mxu0
        %1243 = vdwg.mxu0
        %v1245 = vsel %vm1167, %v1156, 0
        %v1248 = vsel %vm1167, %v1160, 0
        %1250 = vmatprep.subr.mxu0 0.0
        %1251 = vmatpush1.xpose.msra.mxu0 0.0
        %1252 = vmatprep.subr.mxu0 0.0
        %1253 = vmatpush1.xpose.msra.mxu0 0.0
        %1254 = vmatprep.subr.mxu0 0.0
        %1255 = vmatpush1.xpose.msra.mxu0 0.0
        %1256 = vmatprep.subr.mxu0 0.0
        %1257 = vmatpush1.xpose.msra.mxu0 0.0
        %1258 = vmatprep.subr.mxu0 0.0
        %1259 = vmatpush1.xpose.msra.mxu0 0.0
        %1260 = vmatprep.subr.mxu0 0.0
        %1261 = vmatpush1.xpose.msra.mxu0 0.0
        %1262 = vmatprep.subr.mxu0 0.0
        %1263 = vmatpush1.xpose.msra.mxu0 0.0
        %1264 = vmatprep.subr.mxu0 0.0
        %1265 = vmatpush1.xpose.msra.mxu0 0.0
        %1266 = vmatprep.subr.mxu0 0.0
        %1267 = vmatpush1.xpose.msra.mxu0 0.0
        %1268 = vmatprep.subr.mxu0 0.0
        %1269 = vmatpush1.xpose.msra.mxu0 0.0
        %1270 = vmatprep.subr.mxu0 0.0
        %1271 = vmatpush1.xpose.msra.mxu0 0.0
        %1272 = vmatprep.subr.mxu0 0.0
        %1273 = vmatpush1.xpose.msra.mxu0 0.0
        %1274 = vmatprep.subr.mxu0 0.0
        %1275 = vmatpush1.xpose.msra.mxu0 0.0
        %1276 = vmatprep.subr.mxu0 0.0
        %1277 = vmatpush1.xpose.msra.mxu0 0.0
        %1278 = vmatprep.subr.mxu0 0.0
        %1279 = vmatpush1.xpose.msra.mxu0 0.0
        %1280 = vmatprep.subr.mxu0 0.0
        %1281 = vmatpush1.xpose.msra.mxu0 %v1248
        %1282 = vmatprep.subr.mxu0 0.0
        %1283 = vmatpush2.xpose.msra.mxu0 0.0
        %1284 = vmatprep.subr.mxu0 0.0
        %1285 = vmatpush2.xpose.msra.mxu0 0.0
        %1286 = vmatprep.subr.mxu0 0.0
        %1287 = vmatpush2.xpose.msra.mxu0 0.0
        %1288 = vmatprep.subr.mxu0 0.0
        %1289 = vmatpush2.xpose.msra.mxu0 0.0
        %1290 = vmatprep.subr.mxu0 0.0
        %1291 = vmatpush2.xpose.msra.mxu0 0.0
        %1292 = vmatprep.subr.mxu0 0.0
        %1293 = vmatpush2.xpose.msra.mxu0 0.0
        %1294 = vmatprep.subr.mxu0 0.0
        %1295 = vmatpush2.xpose.msra.mxu0 0.0
        %1296 = vmatprep.subr.mxu0 0.0
        %1297 = vmatpush2.xpose.msra.mxu0 0.0
        %1298 = vmatprep.subr.mxu0 0.0
        %1299 = vmatpush2.xpose.msra.mxu0 0.0
        %1300 = vmatprep.subr.mxu0 0.0
        %1301 = vmatpush2.xpose.msra.mxu0 0.0
        %1302 = vmatprep.subr.mxu0 0.0
        %1303 = vmatpush2.xpose.msra.mxu0 0.0
        %1304 = vmatprep.subr.mxu0 0.0
        %1305 = vmatpush2.xpose.msra.mxu0 0.0
        %1306 = vmatprep.subr.mxu0 0.0
        %1307 = vmatpush2.xpose.msra.mxu0 0.0
        %1308 = vmatprep.subr.mxu0 0.0
        %1309 = vmatpush2.xpose.msra.mxu0 0.0
        %1310 = vmatprep.subr.mxu0 0.0
        %1311 = vmatpush2.xpose.msra.mxu0 0.0
        %1312 = vmatprep.subr.mxu0 0.0
        %1313 = vmatpush2.xpose.msra.mxu0 0.0
        %1314 = vmatprep.mubr.f32.mxu0 0.0
        %1315 = vmatmul.mubr.f32.gmra.mxu0 %v1245
        %v1316 = vpop.f32.mrf.mxu0
        %v1317 = vadd.f32 0.0, %v1316
        %v1318 = vpop.f32.mrf.mxu0
        %1319 = vdwg.mxu0
        %v1321 = vsel %vm1167, %v1157, 0
        %v1324 = vsel %vm1167, %v1161, 0
        %1326 = vmatprep.subr.mxu0 0.0
        %1327 = vmatpush1.xpose.msra.mxu0 0.0
        %1328 = vmatprep.subr.mxu0 0.0
        %1329 = vmatpush1.xpose.msra.mxu0 0.0
        %1330 = vmatprep.subr.mxu0 0.0
        %1331 = vmatpush1.xpose.msra.mxu0 0.0
        %1332 = vmatprep.subr.mxu0 0.0
        %1333 = vmatpush1.xpose.msra.mxu0 0.0
        %1334 = vmatprep.subr.mxu0 0.0
        %1335 = vmatpush1.xpose.msra.mxu0 0.0
        %1336 = vmatprep.subr.mxu0 0.0
        %1337 = vmatpush1.xpose.msra.mxu0 0.0
        %1338 = vmatprep.subr.mxu0 0.0
        %1339 = vmatpush1.xpose.msra.mxu0 0.0
        %1340 = vmatprep.subr.mxu0 0.0
        %1341 = vmatpush1.xpose.msra.mxu0 0.0
        %1342 = vmatprep.subr.mxu0 0.0
        %1343 = vmatpush1.xpose.msra.mxu0 0.0
        %1344 = vmatprep.subr.mxu0 0.0
        %1345 = vmatpush1.xpose.msra.mxu0 0.0
        %1346 = vmatprep.subr.mxu0 0.0
        %1347 = vmatpush1.xpose.msra.mxu0 0.0
        %1348 = vmatprep.subr.mxu0 0.0
        %1349 = vmatpush1.xpose.msra.mxu0 0.0
        %1350 = vmatprep.subr.mxu0 0.0
        %1351 = vmatpush1.xpose.msra.mxu0 0.0
        %1352 = vmatprep.subr.mxu0 0.0
        %1353 = vmatpush1.xpose.msra.mxu0 0.0
        %1354 = vmatprep.subr.mxu0 0.0
        %1355 = vmatpush1.xpose.msra.mxu0 0.0
        %1356 = vmatprep.subr.mxu0 0.0
        %1357 = vmatpush1.xpose.msra.mxu0 %v1324
        %1358 = vmatprep.subr.mxu0 0.0
        %1359 = vmatpush2.xpose.msra.mxu0 0.0
        %1360 = vmatprep.subr.mxu0 0.0
        %1361 = vmatpush2.xpose.msra.mxu0 0.0
        %1362 = vmatprep.subr.mxu0 0.0
        %1363 = vmatpush2.xpose.msra.mxu0 0.0
        %1364 = vmatprep.subr.mxu0 0.0
        %1365 = vmatpush2.xpose.msra.mxu0 0.0
        %1366 = vmatprep.subr.mxu0 0.0
        %1367 = vmatpush2.xpose.msra.mxu0 0.0
        %1368 = vmatprep.subr.mxu0 0.0
        %1369 = vmatpush2.xpose.msra.mxu0 0.0
        %1370 = vmatprep.subr.mxu0 0.0
        %1371 = vmatpush2.xpose.msra.mxu0 0.0
        %1372 = vmatprep.subr.mxu0 0.0
        %1373 = vmatpush2.xpose.msra.mxu0 0.0
        %1374 = vmatprep.subr.mxu0 0.0
        %1375 = vmatpush2.xpose.msra.mxu0 0.0
        %1376 = vmatprep.subr.mxu0 0.0
        %1377 = vmatpush2.xpose.msra.mxu0 0.0
        %1378 = vmatprep.subr.mxu0 0.0
        %1379 = vmatpush2.xpose.msra.mxu0 0.0
        %1380 = vmatprep.subr.mxu0 0.0
        %1381 = vmatpush2.xpose.msra.mxu0 0.0
        %1382 = vmatprep.subr.mxu0 0.0
        %1383 = vmatpush2.xpose.msra.mxu0 0.0
        %1384 = vmatprep.subr.mxu0 0.0
        %1385 = vmatpush2.xpose.msra.mxu0 0.0
        %1386 = vmatprep.subr.mxu0 0.0
        %1387 = vmatpush2.xpose.msra.mxu0 0.0
        %1388 = vmatprep.subr.mxu0 0.0
        %1389 = vmatpush2.xpose.msra.mxu0 0.0
        %1390 = vmatprep.mubr.f32.mxu0 0.0
        %1391 = vmatmul.mubr.f32.gmra.mxu0 %v1321
        %v1392 = vpop.f32.mrf.mxu0
        %v1393 = vadd.f32 0.0, %v1392
        %v1394 = vpop.f32.mrf.mxu0
        %1395 = vdwg.mxu0
        %v1397 = vsel %vm1167, %v1158, 0
        %v1400 = vsel %vm1167, %v1162, 0
        %1402 = vmatprep.subr.mxu0 0.0
        %1403 = vmatpush1.xpose.msra.mxu0 0.0
        %1404 = vmatprep.subr.mxu0 0.0
        %1405 = vmatpush1.xpose.msra.mxu0 0.0
        %1406 = vmatprep.subr.mxu0 0.0
        %1407 = vmatpush1.xpose.msra.mxu0 0.0
        %1408 = vmatprep.subr.mxu0 0.0
        %1409 = vmatpush1.xpose.msra.mxu0 0.0
        %1410 = vmatprep.subr.mxu0 0.0
        %1411 = vmatpush1.xpose.msra.mxu0 0.0
        %1412 = vmatprep.subr.mxu0 0.0
        %1413 = vmatpush1.xpose.msra.mxu0 0.0
        %1414 = vmatprep.subr.mxu0 0.0
        %1415 = vmatpush1.xpose.msra.mxu0 0.0
        %1416 = vmatprep.subr.mxu0 0.0
        %1417 = vmatpush1.xpose.msra.mxu0 0.0
        %1418 = vmatprep.subr.mxu0 0.0
        %1419 = vmatpush1.xpose.msra.mxu0 0.0
        %1420 = vmatprep.subr.mxu0 0.0
        %1421 = vmatpush1.xpose.msra.mxu0 0.0
        %1422 = vmatprep.subr.mxu0 0.0
        %1423 = vmatpush1.xpose.msra.mxu0 0.0
        %1424 = vmatprep.subr.mxu0 0.0
        %1425 = vmatpush1.xpose.msra.mxu0 0.0
        %1426 = vmatprep.subr.mxu0 0.0
        %1427 = vmatpush1.xpose.msra.mxu0 0.0
        %1428 = vmatprep.subr.mxu0 0.0
        %1429 = vmatpush1.xpose.msra.mxu0 0.0
        %1430 = vmatprep.subr.mxu0 0.0
        %1431 = vmatpush1.xpose.msra.mxu0 0.0
        %1432 = vmatprep.subr.mxu0 0.0
        %1433 = vmatpush1.xpose.msra.mxu0 %v1400
        %1434 = vmatprep.subr.mxu0 0.0
        %1435 = vmatpush2.xpose.msra.mxu0 0.0
        %1436 = vmatprep.subr.mxu0 0.0
        %1437 = vmatpush2.xpose.msra.mxu0 0.0
        %1438 = vmatprep.subr.mxu0 0.0
        %1439 = vmatpush2.xpose.msra.mxu0 0.0
        %1440 = vmatprep.subr.mxu0 0.0
        %1441 = vmatpush2.xpose.msra.mxu0 0.0
        %1442 = vmatprep.subr.mxu0 0.0
        %1443 = vmatpush2.xpose.msra.mxu0 0.0
        %1444 = vmatprep.subr.mxu0 0.0
        %1445 = vmatpush2.xpose.msra.mxu0 0.0
        %1446 = vmatprep.subr.mxu0 0.0
        %1447 = vmatpush2.xpose.msra.mxu0 0.0
        %1448 = vmatprep.subr.mxu0 0.0
        %1449 = vmatpush2.xpose.msra.mxu0 0.0
        %1450 = vmatprep.subr.mxu0 0.0
        %1451 = vmatpush2.xpose.msra.mxu0 0.0
        %1452 = vmatprep.subr.mxu0 0.0
        %1453 = vmatpush2.xpose.msra.mxu0 0.0
        %1454 = vmatprep.subr.mxu0 0.0
        %1455 = vmatpush2.xpose.msra.mxu0 0.0
        %1456 = vmatprep.subr.mxu0 0.0
        %1457 = vmatpush2.xpose.msra.mxu0 0.0
        %1458 = vmatprep.subr.mxu0 0.0
        %1459 = vmatpush2.xpose.msra.mxu0 0.0
        %1460 = vmatprep.subr.mxu0 0.0
        %1461 = vmatpush2.xpose.msra.mxu0 0.0
        %1462 = vmatprep.subr.mxu0 0.0
        %1463 = vmatpush2.xpose.msra.mxu0 0.0
        %1464 = vmatprep.subr.mxu0 0.0
        %1465 = vmatpush2.xpose.msra.mxu0 0.0
        %1466 = vmatprep.mubr.f32.mxu0 0.0
        %1467 = vmatmul.mubr.f32.gmra.mxu0 %v1397
        %v1468 = vpop.f32.mrf.mxu0
        %v1469 = vadd.f32 0.0, %v1468
        %v1470 = vpop.f32.mrf.mxu0
        %1471 = vdwg.mxu0
        %v1472 = vsel %vm1167, %v1241, -inf
        %1473 = vmax.xlane.f32.xlu0 %v1472
        %v1474 = vpop.xlane.xlu0 %1473
        %v1475 = vsel %vm1167, %v1317, -inf
        %1476 = vmax.xlane.f32.xlu0 %v1475
        %v1477 = vpop.xlane.xlu0 %1476
        %v1478 = vsel %vm1167, %v1393, -inf
        %1479 = vmax.xlane.f32.xlu0 %v1478
        %v1480 = vpop.xlane.xlu0 %1479
        %v1481 = vsel %vm1167, %v1469, -inf
        %1482 = vmax.xlane.f32.xlu0 %v1481
        %v1483 = vpop.xlane.xlu0 %1482
        %v1484 = vmax.f32 %v1474, -1e+30
        %v1485 = vmax.f32 %v1477, -1e+30
        %v1486 = vmax.f32 %v1480, -1e+30
        %v1487 = vmax.f32 %v1483, -1e+30
        %v1488 = vsub.f32 -1e+30, %v1484
        %v1489 = vsub.f32 -1e+30, %v1485
        %v1490 = vsub.f32 -1e+30, %v1486
        %v1491 = vsub.f32 -1e+30, %v1487
        %v1492 = vmul.f32 %v1488, 1.442695
        %v1493 = vpow.pop %v1492
        %v1494 = vmul.f32 %v1489, 1.442695
        %v1495 = vpow.pop %v1494
        %v1496 = vmul.f32 %v1490, 1.442695
        %v1497 = vpow.pop %v1496
        %v1498 = vmul.f32 %v1491, 1.442695
        %v1499 = vpow.pop %v1498
        %v1500 = vsub.f32 %v1241, %v1484
        %v1501 = vsub.f32 %v1317, %v1485
        %v1502 = vsub.f32 %v1393, %v1486
        %v1503 = vsub.f32 %v1469, %v1487
        %v1504 = vmul.f32 %v1500, 1.442695
        %v1505 = vpow.pop %v1504
        %v1506 = vmul.f32 %v1501, 1.442695
        %v1507 = vpow.pop %v1506
        %v1508 = vmul.f32 %v1502, 1.442695
        %v1509 = vpow.pop %v1508
        %v1510 = vmul.f32 %v1503, 1.442695
        %v1511 = vpow.pop %v1510
        %v1512 = vmul.f32 %v1493, 0.0
        %v1513 = vmul.f32 %v1495, 0.0
        %v1514 = vmul.f32 %v1497, 0.0
        %v1515 = vmul.f32 %v1499, 0.0
        %v1516 = vsel %vm1167, %v1505, 0.0
        %1517 = vadd.xlane.f32.xlu0 %v1516
        %v1518 = vpop.xlane.xlu0 %1517
        %v1519 = vsel %vm1167, %v1507, 0.0
        %1520 = vadd.xlane.f32.xlu0 %v1519
        %v1521 = vpop.xlane.xlu0 %1520
        %v1522 = vsel %vm1167, %v1509, 0.0
        %1523 = vadd.xlane.f32.xlu0 %v1522
        %v1524 = vpop.xlane.xlu0 %1523
        %v1525 = vsel %vm1167, %v1511, 0.0
        %1526 = vadd.xlane.f32.xlu0 %v1525
        %v1527 = vpop.xlane.xlu0 %1526
        %v1528 = vadd.f32 %v1512, %v1518
        %v1529 = vadd.f32 %v1513, %v1521
        %v1530 = vadd.f32 %v1514, %v1524
        %v1531 = vadd.f32 %v1515, %v1527
        %v1533 = vsel %vm1167, %v1505, 0
        %1535 = vmatprep.subr.mxu0 0.0
        %1536 = vmatpush1.msra.mxu0 0.0
        %1537 = vmatprep.subr.mxu0 0.0
        %1538 = vmatpush1.msra.mxu0 0.0
        %1539 = vmatprep.subr.mxu0 0.0
        %1540 = vmatpush1.msra.mxu0 0.0
        %1541 = vmatprep.subr.mxu0 0.0
        %1542 = vmatpush1.msra.mxu0 0.0
        %1543 = vmatprep.subr.mxu0 0.0
        %1544 = vmatpush1.msra.mxu0 0.0
        %1545 = vmatprep.subr.mxu0 0.0
        %1546 = vmatpush1.msra.mxu0 0.0
        %1547 = vmatprep.subr.mxu0 0.0
        %1548 = vmatpush1.msra.mxu0 0.0
        %1549 = vmatprep.subr.mxu0 0.0
        %1550 = vmatpush1.msra.mxu0 0.0
        %1551 = vmatprep.subr.mxu0 0.0
        %1552 = vmatpush1.msra.mxu0 0.0
        %1553 = vmatprep.subr.mxu0 0.0
        %1554 = vmatpush1.msra.mxu0 0.0
        %1555 = vmatprep.subr.mxu0 0.0
        %1556 = vmatpush1.msra.mxu0 0.0
        %1557 = vmatprep.subr.mxu0 0.0
        %1558 = vmatpush1.msra.mxu0 0.0
        %1559 = vmatprep.subr.mxu0 0.0
        %1560 = vmatpush1.msra.mxu0 0.0
        %1561 = vmatprep.subr.mxu0 0.0
        %1562 = vmatpush1.msra.mxu0 0.0
        %1563 = vmatprep.subr.mxu0 0.0
        %1564 = vmatpush1.msra.mxu0 0.0
        %1565 = vmatprep.subr.mxu0 0.0
        %1566 = vmatpush1.msra.mxu0 %v1163
        %1567 = vmatprep.subr.mxu0 0.0
        %1568 = vmatpush2.msra.mxu0 0.0
        %1569 = vmatprep.subr.mxu0 0.0
        %1570 = vmatpush2.msra.mxu0 0.0
        %1571 = vmatprep.subr.mxu0 0.0
        %1572 = vmatpush2.msra.mxu0 0.0
        %1573 = vmatprep.subr.mxu0 0.0
        %1574 = vmatpush2.msra.mxu0 0.0
        %1575 = vmatprep.subr.mxu0 0.0
        %1576 = vmatpush2.msra.mxu0 0.0
        %1577 = vmatprep.subr.mxu0 0.0
        %1578 = vmatpush2.msra.mxu0 0.0
        %1579 = vmatprep.subr.mxu0 0.0
        %1580 = vmatpush2.msra.mxu0 0.0
        %1581 = vmatprep.subr.mxu0 0.0
        %1582 = vmatpush2.msra.mxu0 0.0
        %1583 = vmatprep.subr.mxu0 0.0
        %1584 = vmatpush2.msra.mxu0 0.0
        %1585 = vmatprep.subr.mxu0 0.0
        %1586 = vmatpush2.msra.mxu0 0.0
        %1587 = vmatprep.subr.mxu0 0.0
        %1588 = vmatpush2.msra.mxu0 0.0
        %1589 = vmatprep.subr.mxu0 0.0
        %1590 = vmatpush2.msra.mxu0 0.0
        %1591 = vmatprep.subr.mxu0 0.0
        %1592 = vmatpush2.msra.mxu0 0.0
        %1593 = vmatprep.subr.mxu0 0.0
        %1594 = vmatpush2.msra.mxu0 0.0
        %1595 = vmatprep.subr.mxu0 0.0
        %1596 = vmatpush2.msra.mxu0 0.0
        %1597 = vmatprep.subr.mxu0 0.0
        %1598 = vmatpush2.msra.mxu0 0.0
        %1599 = vmatprep.mubr.f32.mxu0 0.0
        %1600 = vmatmul.mubr.f32.gmra.mxu0 %v1533
        %v1601 = vpop.f32.mrf.mxu0
        %v1602 = vadd.f32 0.0, %v1601
        %v1603 = vpop.f32.mrf.mxu0
        %1604 = vdwg.mxu0
        %v1606 = vsel %vm1167, %v1507, 0
        %1608 = vmatprep.subr.mxu0 0.0
        %1609 = vmatpush1.msra.mxu0 0.0
        %1610 = vmatprep.subr.mxu0 0.0
        %1611 = vmatpush1.msra.mxu0 0.0
        %1612 = vmatprep.subr.mxu0 0.0
        %1613 = vmatpush1.msra.mxu0 0.0
        %1614 = vmatprep.subr.mxu0 0.0
        %1615 = vmatpush1.msra.mxu0 0.0
        %1616 = vmatprep.subr.mxu0 0.0
        %1617 = vmatpush1.msra.mxu0 0.0
        %1618 = vmatprep.subr.mxu0 0.0
        %1619 = vmatpush1.msra.mxu0 0.0
        %1620 = vmatprep.subr.mxu0 0.0
        %1621 = vmatpush1.msra.mxu0 0.0
        %1622 = vmatprep.subr.mxu0 0.0
        %1623 = vmatpush1.msra.mxu0 0.0
        %1624 = vmatprep.subr.mxu0 0.0
        %1625 = vmatpush1.msra.mxu0 0.0
        %1626 = vmatprep.subr.mxu0 0.0
        %1627 = vmatpush1.msra.mxu0 0.0
        %1628 = vmatprep.subr.mxu0 0.0
        %1629 = vmatpush1.msra.mxu0 0.0
        %1630 = vmatprep.subr.mxu0 0.0
        %1631 = vmatpush1.msra.mxu0 0.0
        %1632 = vmatprep.subr.mxu0 0.0
        %1633 = vmatpush1.msra.mxu0 0.0
        %1634 = vmatprep.subr.mxu0 0.0
        %1635 = vmatpush1.msra.mxu0 0.0
        %1636 = vmatprep.subr.mxu0 0.0
        %1637 = vmatpush1.msra.mxu0 0.0
        %1638 = vmatprep.subr.mxu0 0.0
        %1639 = vmatpush1.msra.mxu0 %v1164
        %1640 = vmatprep.subr.mxu0 0.0
        %1641 = vmatpush2.msra.mxu0 0.0
        %1642 = vmatprep.subr.mxu0 0.0
        %1643 = vmatpush2.msra.mxu0 0.0
        %1644 = vmatprep.subr.mxu0 0.0
        %1645 = vmatpush2.msra.mxu0 0.0
        %1646 = vmatprep.subr.mxu0 0.0
        %1647 = vmatpush2.msra.mxu0 0.0
        %1648 = vmatprep.subr.mxu0 0.0
        %1649 = vmatpush2.msra.mxu0 0.0
        %1650 = vmatprep.subr.mxu0 0.0
        %1651 = vmatpush2.msra.mxu0 0.0
        %1652 = vmatprep.subr.mxu0 0.0
        %1653 = vmatpush2.msra.mxu0 0.0
        %1654 = vmatprep.subr.mxu0 0.0
        %1655 = vmatpush2.msra.mxu0 0.0
        %1656 = vmatprep.subr.mxu0 0.0
        %1657 = vmatpush2.msra.mxu0 0.0
        %1658 = vmatprep.subr.mxu0 0.0
        %1659 = vmatpush2.msra.mxu0 0.0
        %1660 = vmatprep.subr.mxu0 0.0
        %1661 = vmatpush2.msra.mxu0 0.0
        %1662 = vmatprep.subr.mxu0 0.0
        %1663 = vmatpush2.msra.mxu0 0.0
        %1664 = vmatprep.subr.mxu0 0.0
        %1665 = vmatpush2.msra.mxu0 0.0
        %1666 = vmatprep.subr.mxu0 0.0
        %1667 = vmatpush2.msra.mxu0 0.0
        %1668 = vmatprep.subr.mxu0 0.0
        %1669 = vmatpush2.msra.mxu0 0.0
        %1670 = vmatprep.subr.mxu0 0.0
        %1671 = vmatpush2.msra.mxu0 0.0
        %1672 = vmatprep.mubr.f32.mxu0 0.0
        %1673 = vmatmul.mubr.f32.gmra.mxu0 %v1606
        %v1674 = vpop.f32.mrf.mxu0
        %v1675 = vadd.f32 0.0, %v1674
        %v1676 = vpop.f32.mrf.mxu0
        %1677 = vdwg.mxu0
        %v1679 = vsel %vm1167, %v1509, 0
        %1681 = vmatprep.subr.mxu0 0.0
        %1682 = vmatpush1.msra.mxu0 0.0
        %1683 = vmatprep.subr.mxu0 0.0
        %1684 = vmatpush1.msra.mxu0 0.0
        %1685 = vmatprep.subr.mxu0 0.0
        %1686 = vmatpush1.msra.mxu0 0.0
        %1687 = vmatprep.subr.mxu0 0.0
        %1688 = vmatpush1.msra.mxu0 0.0
        %1689 = vmatprep.subr.mxu0 0.0
        %1690 = vmatpush1.msra.mxu0 0.0
        %1691 = vmatprep.subr.mxu0 0.0
        %1692 = vmatpush1.msra.mxu0 0.0
        %1693 = vmatprep.subr.mxu0 0.0
        %1694 = vmatpush1.msra.mxu0 0.0
        %1695 = vmatprep.subr.mxu0 0.0
        %1696 = vmatpush1.msra.mxu0 0.0
        %1697 = vmatprep.subr.mxu0 0.0
        %1698 = vmatpush1.msra.mxu0 0.0
        %1699 = vmatprep.subr.mxu0 0.0
        %1700 = vmatpush1.msra.mxu0 0.0
        %1701 = vmatprep.subr.mxu0 0.0
        %1702 = vmatpush1.msra.mxu0 0.0
        %1703 = vmatprep.subr.mxu0 0.0
        %1704 = vmatpush1.msra.mxu0 0.0
        %1705 = vmatprep.subr.mxu0 0.0
        %1706 = vmatpush1.msra.mxu0 0.0
        %1707 = vmatprep.subr.mxu0 0.0
        %1708 = vmatpush1.msra.mxu0 0.0
        %1709 = vmatprep.subr.mxu0 0.0
        %1710 = vmatpush1.msra.mxu0 0.0
        %1711 = vmatprep.subr.mxu0 0.0
        %1712 = vmatpush1.msra.mxu0 %v1165
        %1713 = vmatprep.subr.mxu0 0.0
        %1714 = vmatpush2.msra.mxu0 0.0
        %1715 = vmatprep.subr.mxu0 0.0
        %1716 = vmatpush2.msra.mxu0 0.0
        %1717 = vmatprep.subr.mxu0 0.0
        %1718 = vmatpush2.msra.mxu0 0.0
        %1719 = vmatprep.subr.mxu0 0.0
        %1720 = vmatpush2.msra.mxu0 0.0
        %1721 = vmatprep.subr.mxu0 0.0
        %1722 = vmatpush2.msra.mxu0 0.0
        %1723 = vmatprep.subr.mxu0 0.0
        %1724 = vmatpush2.msra.mxu0 0.0
        %1725 = vmatprep.subr.mxu0 0.0
        %1726 = vmatpush2.msra.mxu0 0.0
        %1727 = vmatprep.subr.mxu0 0.0
        %1728 = vmatpush2.msra.mxu0 0.0
        %1729 = vmatprep.subr.mxu0 0.0
        %1730 = vmatpush2.msra.mxu0 0.0
        %1731 = vmatprep.subr.mxu0 0.0
        %1732 = vmatpush2.msra.mxu0 0.0
        %1733 = vmatprep.subr.mxu0 0.0
        %1734 = vmatpush2.msra.mxu0 0.0
        %1735 = vmatprep.subr.mxu0 0.0
        %1736 = vmatpush2.msra.mxu0 0.0
        %1737 = vmatprep.subr.mxu0 0.0
        %1738 = vmatpush2.msra.mxu0 0.0
        %1739 = vmatprep.subr.mxu0 0.0
        %1740 = vmatpush2.msra.mxu0 0.0
        %1741 = vmatprep.subr.mxu0 0.0
        %1742 = vmatpush2.msra.mxu0 0.0
        %1743 = vmatprep.subr.mxu0 0.0
        %1744 = vmatpush2.msra.mxu0 0.0
        %1745 = vmatprep.mubr.f32.mxu0 0.0
        %1746 = vmatmul.mubr.f32.gmra.mxu0 %v1679
        %v1747 = vpop.f32.mrf.mxu0
        %v1748 = vadd.f32 0.0, %v1747
        %v1749 = vpop.f32.mrf.mxu0
        %1750 = vdwg.mxu0
        %v1752 = vsel %vm1167, %v1511, 0
        %1754 = vmatprep.subr.mxu0 0.0
        %1755 = vmatpush1.msra.mxu0 0.0
        %1756 = vmatprep.subr.mxu0 0.0
        %1757 = vmatpush1.msra.mxu0 0.0
        %1758 = vmatprep.subr.mxu0 0.0
        %1759 = vmatpush1.msra.mxu0 0.0
        %1760 = vmatprep.subr.mxu0 0.0
        %1761 = vmatpush1.msra.mxu0 0.0
        %1762 = vmatprep.subr.mxu0 0.0
        %1763 = vmatpush1.msra.mxu0 0.0
        %1764 = vmatprep.subr.mxu0 0.0
        %1765 = vmatpush1.msra.mxu0 0.0
        %1766 = vmatprep.subr.mxu0 0.0
        %1767 = vmatpush1.msra.mxu0 0.0
        %1768 = vmatprep.subr.mxu0 0.0
        %1769 = vmatpush1.msra.mxu0 0.0
        %1770 = vmatprep.subr.mxu0 0.0
        %1771 = vmatpush1.msra.mxu0 0.0
        %1772 = vmatprep.subr.mxu0 0.0
        %1773 = vmatpush1.msra.mxu0 0.0
        %1774 = vmatprep.subr.mxu0 0.0
        %1775 = vmatpush1.msra.mxu0 0.0
        %1776 = vmatprep.subr.mxu0 0.0
        %1777 = vmatpush1.msra.mxu0 0.0
        %1778 = vmatprep.subr.mxu0 0.0
        %1779 = vmatpush1.msra.mxu0 0.0
        %1780 = vmatprep.subr.mxu0 0.0
        %1781 = vmatpush1.msra.mxu0 0.0
        %1782 = vmatprep.subr.mxu0 0.0
        %1783 = vmatpush1.msra.mxu0 0.0
        %1784 = vmatprep.subr.mxu0 0.0
        %1785 = vmatpush1.msra.mxu0 %v1166
        %1786 = vmatprep.subr.mxu0 0.0
        %1787 = vmatpush2.msra.mxu0 0.0
        %1788 = vmatprep.subr.mxu0 0.0
        %1789 = vmatpush2.msra.mxu0 0.0
        %1790 = vmatprep.subr.mxu0 0.0
        %1791 = vmatpush2.msra.mxu0 0.0
        %1792 = vmatprep.subr.mxu0 0.0
        %1793 = vmatpush2.msra.mxu0 0.0
        %1794 = vmatprep.subr.mxu0 0.0
        %1795 = vmatpush2.msra.mxu0 0.0
        %1796 = vmatprep.subr.mxu0 0.0
        %1797 = vmatpush2.msra.mxu0 0.0
        %1798 = vmatprep.subr.mxu0 0.0
        %1799 = vmatpush2.msra.mxu0 0.0
        %1800 = vmatprep.subr.mxu0 0.0
        %1801 = vmatpush2.msra.mxu0 0.0
        %1802 = vmatprep.subr.mxu0 0.0
        %1803 = vmatpush2.msra.mxu0 0.0
        %1804 = vmatprep.subr.mxu0 0.0
        %1805 = vmatpush2.msra.mxu0 0.0
        %1806 = vmatprep.subr.mxu0 0.0
        %1807 = vmatpush2.msra.mxu0 0.0
        %1808 = vmatprep.subr.mxu0 0.0
        %1809 = vmatpush2.msra.mxu0 0.0
        %1810 = vmatprep.subr.mxu0 0.0
        %1811 = vmatpush2.msra.mxu0 0.0
        %1812 = vmatprep.subr.mxu0 0.0
        %1813 = vmatpush2.msra.mxu0 0.0
        %1814 = vmatprep.subr.mxu0 0.0
        %1815 = vmatpush2.msra.mxu0 0.0
        %1816 = vmatprep.subr.mxu0 0.0
        %1817 = vmatpush2.msra.mxu0 0.0
        %1818 = vmatprep.mubr.f32.mxu0 0.0
        %1819 = vmatmul.mubr.f32.gmra.mxu0 %v1752
        %v1820 = vpop.f32.mrf.mxu0
        %v1821 = vadd.f32 0.0, %v1820
        %v1822 = vpop.f32.mrf.mxu0
        %1823 = vdwg.mxu0
        %v1824 = vadd.f32 %v1512, %v1602
        %v1825 = vadd.f32 %v1513, %v1675
        %v1826 = vadd.f32 %v1514, %v1748
        %v1827 = vadd.f32 %v1515, %v1821
        %v1828 = vrcp.pop %v1528
        %v1829 = vrcp.pop %v1529
        %v1830 = vrcp.pop %v1530
        %v1831 = vrcp.pop %v1531
        %v1832 = vmul.f32 %v1824, %v1828
        %v1833 = vmul.f32 %v1825, %v1829
        %v1834 = vmul.f32 %v1826, %v1830
        %v1835 = vmul.f32 %v1827, %v1831
        %v1836 = vcombine.low %v1832, %v1834
        %v1837 = vcombine.high %v1832, %v1834
        %v1839 = vunpack.c.l.s4 1983009808
        %v1840 = vunpack.c.0.s8 %v1839
        %v1841 = vlaneseq
        %v1842 = vshrl.u32 %v1841, 7
        %v1843 = vsub.s32 %v1840, %v1842
        %v1844 = vrot.slane %v1836, %v1843
        %v1846 = vunpack.c.l.s4 1983009808
        %v1847 = vunpack.c.0.s8 %v1846
        %v1848 = vlaneseq
        %v1849 = vshrl.u32 %v1848, 7
        %v1850 = vsub.s32 %v1847, %v1849
        %v1851 = vrot.slane %v1837, %v1850
        %v1852 = vcombine.low %v1833, %v1835
        %v1853 = vcombine.high %v1833, %v1835
        %v1855 = vunpack.c.l.s4 1983009808
        %v1856 = vunpack.c.0.s8 %v1855
        %v1857 = vlaneseq
        %v1858 = vshrl.u32 %v1857, 7
        %v1859 = vsub.s32 %v1856, %v1858
        %v1860 = vrot.slane %v1852, %v1859
        %v1862 = vunpack.c.l.s4 1983009808
        %v1863 = vunpack.c.0.s8 %v1862
        %v1864 = vlaneseq
        %v1865 = vshrl.u32 %v1864, 7
        %v1866 = vsub.s32 %v1863, %v1865
        %v1867 = vrot.slane %v1853, %v1866
        %v1868 = vcombine.low %v1844, %v1860
        %v1869 = vcombine.high %v1844, %v1860
        %v1871 = vunpack.c.l.s4 1934713408
        %v1872 = vunpack.c.0.s8 %v1871
        %v1873 = vlaneseq
        %v1874 = vshrl.u32 %v1873, 7
        %v1875 = vsub.s32 %v1872, %v1874
        %v1876 = vrot.slane %v1868, %v1875
        %v1878 = vunpack.c.l.s4 1934713408
        %v1879 = vunpack.c.0.s8 %v1878
        %v1880 = vlaneseq
        %v1881 = vshrl.u32 %v1880, 7
        %v1882 = vsub.s32 %v1879, %v1881
        %v1883 = vrot.slane %v1869, %v1882
        %v1884 = vcombine.low %v1851, %v1867
        %v1885 = vcombine.high %v1851, %v1867
        %v1887 = vunpack.c.l.s4 1934713408
        %v1888 = vunpack.c.0.s8 %v1887
        %v1889 = vlaneseq
        %v1890 = vshrl.u32 %v1889, 7
        %v1891 = vsub.s32 %v1888, %v1890
        %v1892 = vrot.slane %v1884, %v1891
        %v1894 = vunpack.c.l.s4 1934713408
        %v1895 = vunpack.c.0.s8 %v1894
        %v1896 = vlaneseq
        %v1897 = vshrl.u32 %v1896, 7
        %v1898 = vsub.s32 %v1895, %v1897
        %v1899 = vrot.slane %v1885, %v1898
        %v1900 = vcombine.high %v1876, 0.0
        %v1901 = vcombine.high %v1883, 0.0
        %v1902 = vcombine.high %v1892, 0.0
        %v1903 = vcombine.high %v1899, 0.0
        %v1904 = vcombine.low %v1876, %v1883
        %v1906 = vunpack.c.l.s4 1983009808
        %v1907 = vunpack.c.0.s8 %v1906
        %v1908 = vlaneseq
        %v1909 = vshrl.u32 %v1908, 7
        %v1910 = vsub.s32 %v1907, %v1909
        %v1911 = vrot.slane %v1904, %v1910
        %v1912 = vcombine.low %v1900, %v1901
        %v1914 = vunpack.c.l.s4 1983009808
        %v1915 = vunpack.c.0.s8 %v1914
        %v1916 = vlaneseq
        %v1917 = vshrl.u32 %v1916, 7
        %v1918 = vsub.s32 %v1915, %v1917
        %v1919 = vrot.slane %v1912, %v1918
        %v1920 = vcombine.low %v1892, %v1899
        %v1922 = vunpack.c.l.s4 1983009808
        %v1923 = vunpack.c.0.s8 %v1922
        %v1924 = vlaneseq
        %v1925 = vshrl.u32 %v1924, 7
        %v1926 = vsub.s32 %v1923, %v1925
        %v1927 = vrot.slane %v1920, %v1926
        %v1928 = vcombine.low %v1902, %v1903
        %v1930 = vunpack.c.l.s4 1983009808
        %v1931 = vunpack.c.0.s8 %v1930
        %v1932 = vlaneseq
        %v1933 = vshrl.u32 %v1932, 7
        %v1934 = vsub.s32 %v1931, %v1933
        %v1935 = vrot.slane %v1928, %v1934
        %v1936 = vcombine.low %v1911, %v1919
        %v1937 = vcombine.high %v1911, %v1919
        %v1939 = vunpack.c.l.s4 1934713408
        %v1940 = vunpack.c.0.s8 %v1939
        %v1941 = vlaneseq
        %v1942 = vshrl.u32 %v1941, 7
        %v1943 = vsub.s32 %v1940, %v1942
        %v1944 = vrot.slane %v1936, %v1943
        %v1946 = vunpack.c.l.s4 1934713408
        %v1947 = vunpack.c.0.s8 %v1946
        %v1948 = vlaneseq
        %v1949 = vshrl.u32 %v1948, 7
        %v1950 = vsub.s32 %v1947, %v1949
        %v1951 = vrot.slane %v1937, %v1950
        %v1952 = vcombine.low %v1927, %v1935
        %v1953 = vcombine.high %v1927, %v1935
        %v1955 = vunpack.c.l.s4 1934713408
        %v1956 = vunpack.c.0.s8 %v1955
        %v1957 = vlaneseq
        %v1958 = vshrl.u32 %v1957, 7
        %v1959 = vsub.s32 %v1956, %v1958
        %v1960 = vrot.slane %v1952, %v1959
        %v1962 = vunpack.c.l.s4 1934713408
        %v1963 = vunpack.c.0.s8 %v1962
        %v1964 = vlaneseq
        %v1965 = vshrl.u32 %v1964, 7
        %v1966 = vsub.s32 %v1963, %v1965
        %v1967 = vrot.slane %v1953, %v1966
        %v1968 = vcombine.low %v1944, %v1960
        %v1969 = vcombine.high %v1944, %v1960
        %v1970 = vcombine.low %v1951, %v1967
        %v1971 = vcombine.high %v1951, %v1967
        %1973 = vrot.lane.b32.xlu0 %v1969, 8
        %v1974 = vpop.permute.xlu0 %1973
        %1977 = vrot.lane.b32.xlu0 %v1970, 16
        %v1978 = vpop.permute.xlu0 %1977
        %1981 = vrot.lane.b32.xlu0 %v1971, 24
        %v1982 = vpop.permute.xlu0 %1981
        %v1984 = vsel %vm1167, %v1968, %v1974
        %vm1985 = vcmask 130048
        %v1986 = vsel %vm1985, %v1984, %v1978
        %vm1987 = vcmask 195584
        %v1988 = vsel %vm1987, %v1986, %v1982
        %v1989 = vld [vmem:[#allocation13] sm:$0xff]
        %v1990 = vld [vmem:[#allocation13 + $0x8] sm:$0xff]
        %v1991 = vld [vmem:[#allocation13 + $0x10] sm:$0xff]
        %v1992 = vld [vmem:[#allocation13 + $0x18] sm:$0xff]
        %v1993 = vlaneseq
        %v1994 = vshrl.u32 %v1993, 7
        %v1995 = vsub.s32 3, %v1994
        %v1996 = vrot.slane %v463, %v1995
        %v1998 = vsel %vm939, %v1988, 0
        %2000 = vmatprep.subr.mxu0 0.0
        %2001 = vmatpush1.msra.mxu0 0.0
        %2002 = vmatprep.subr.mxu0 0.0
        %2003 = vmatpush1.msra.mxu0 0.0
        %2004 = vmatprep.subr.mxu0 0.0
        %2005 = vmatpush1.msra.mxu0 0.0
        %2006 = vmatprep.subr.mxu0 0.0
        %2007 = vmatpush1.msra.mxu0 0.0
        %2008 = vmatprep.subr.mxu0 0.0
        %2009 = vmatpush1.msra.mxu0 0.0
        %2010 = vmatprep.subr.mxu0 0.0
        %2011 = vmatpush1.msra.mxu0 0.0
        %2012 = vmatprep.subr.mxu0 0.0
        %2013 = vmatpush1.msra.mxu0 0.0
        %2014 = vmatprep.subr.mxu0 0.0
        %2015 = vmatpush1.msra.mxu0 0.0
        %2016 = vmatprep.subr.mxu0 0.0
        %2017 = vmatpush1.msra.mxu0 0.0
        %2018 = vmatprep.subr.mxu0 0.0
        %2019 = vmatpush1.msra.mxu0 0.0
        %2020 = vmatprep.subr.mxu0 0.0
        %2021 = vmatpush1.msra.mxu0 0.0
        %2022 = vmatprep.subr.mxu0 0.0
        %2023 = vmatpush1.msra.mxu0 0.0
        %2024 = vmatprep.subr.mxu0 0.0
        %2025 = vmatpush1.msra.mxu0 %v1992
        %2026 = vmatprep.subr.mxu0 0.0
        %2027 = vmatpush1.msra.mxu0 %v1991
        %2028 = vmatprep.subr.mxu0 0.0
        %2029 = vmatpush1.msra.mxu0 %v1990
        %2030 = vmatprep.subr.mxu0 0.0
        %2031 = vmatpush1.msra.mxu0 %v1989
        %2032 = vmatprep.subr.mxu0 0.0
        %2033 = vmatpush2.msra.mxu0 0.0
        %2034 = vmatprep.subr.mxu0 0.0
        %2035 = vmatpush2.msra.mxu0 0.0
        %2036 = vmatprep.subr.mxu0 0.0
        %2037 = vmatpush2.msra.mxu0 0.0
        %2038 = vmatprep.subr.mxu0 0.0
        %2039 = vmatpush2.msra.mxu0 0.0
        %2040 = vmatprep.subr.mxu0 0.0
        %2041 = vmatpush2.msra.mxu0 0.0
        %2042 = vmatprep.subr.mxu0 0.0
        %2043 = vmatpush2.msra.mxu0 0.0
        %2044 = vmatprep.subr.mxu0 0.0
        %2045 = vmatpush2.msra.mxu0 0.0
        %2046 = vmatprep.subr.mxu0 0.0
        %2047 = vmatpush2.msra.mxu0 0.0
        %2048 = vmatprep.subr.mxu0 0.0
        %2049 = vmatpush2.msra.mxu0 0.0
        %2050 = vmatprep.subr.mxu0 0.0
        %2051 = vmatpush2.msra.mxu0 0.0
        %2052 = vmatprep.subr.mxu0 0.0
        %2053 = vmatpush2.msra.mxu0 0.0
        %2054 = vmatprep.subr.mxu0 0.0
        %2055 = vmatpush2.msra.mxu0 0.0
        %2056 = vmatprep.subr.mxu0 0.0
        %2057 = vmatpush2.msra.mxu0 0.0
        %2058 = vmatprep.subr.mxu0 0.0
        %2059 = vmatpush2.msra.mxu0 0.0
        %2060 = vmatprep.subr.mxu0 0.0
        %2061 = vmatpush2.msra.mxu0 0.0
        %2062 = vmatprep.subr.mxu0 0.0
        %2063 = vmatpush2.msra.mxu0 0.0
        %2064 = vmatprep.mubr.f32.mxu0 0.0
        %2065 = vmatmul.mubr.f32.gmra.mxu0 %v1998
        %v2066 = vpop.f32.mrf.mxu0
        %v2067 = vadd.f32 %v1996, %v2066
        %v2068 = vpop.f32.mrf.mxu0
        %2069 = vdwg.mxu0
        %v2070 = vadd.f32 %v462, %v2067
        %v2071 = vsel %vm939, %v2070, 0.0
        %2072 = vadd.xlane.f32.xlu0 %v2071
        %v2073 = vpop.xlane.xlu0 %2072
        %v2074 = vrcp.pop 32.0
        %v2075 = vmul.f32 %v2073, %v2074
        %v2076 = vsub.f32 %v2070, %v2075
        %v2077 = vmul.f32 %v2076, %v2076
        %v2078 = vsel %vm939, %v2077, 0.0
        %2079 = vadd.xlane.f32.xlu0 %v2078
        %v2080 = vpop.xlane.xlu0 %2079
        %v2081 = vmul.f32 %v2080, %v2074
        %v2082 = vadd.f32 %v2081, 1e-05
        %v2083 = vrsqrt.pop %v2082
        %v2084 = vmul.f32 %v2076, %v2083
        %v2085 = vlaneseq
        %v2086 = vshrl.u32 %v2085, 7
        %v2087 = vsub.s32 5, %v2086
        %v2088 = vrot.slane %v463, %v2087
        %v2089 = vmul.f32 %v2084, %v2088
        %v2090 = vlaneseq
        %v2091 = vshrl.u32 %v2090, 7
        %v2092 = vsub.s32 6, %v2091
        %v2093 = vrot.slane %v463, %v2092
        %v2094 = vadd.f32 %v2089, %v2093
        %v2095 = vld [vmem:[#allocation15] sm:$0xff]
        %v2096 = vld [vmem:[#allocation15 + $0x8] sm:$0xff]
        %v2097 = vld [vmem:[#allocation15 + $0x10] sm:$0xff]
        %v2098 = vld [vmem:[#allocation15 + $0x18] sm:$0xff]
        %v2099 = vlaneseq
        %v2100 = vshrl.u32 %v2099, 7
        %v2101 = vsub.s32 4, %v2100
        %v2102 = vrot.slane %v463, %v2101
        %v2104 = vsel %vm939, %v2094, 0
        %2106 = vmatprep.subr.mxu0 0.0
        %2107 = vmatpush1.msra.mxu0 0.0
        %2108 = vmatprep.subr.mxu0 0.0
        %2109 = vmatpush1.msra.mxu0 0.0
        %2110 = vmatprep.subr.mxu0 0.0
        %2111 = vmatpush1.msra.mxu0 0.0
        %2112 = vmatprep.subr.mxu0 0.0
        %2113 = vmatpush1.msra.mxu0 0.0
        %2114 = vmatprep.subr.mxu0 0.0
        %2115 = vmatpush1.msra.mxu0 0.0
        %2116 = vmatprep.subr.mxu0 0.0
        %2117 = vmatpush1.msra.mxu0 0.0
        %2118 = vmatprep.subr.mxu0 0.0
        %2119 = vmatpush1.msra.mxu0 0.0
        %2120 = vmatprep.subr.mxu0 0.0
        %2121 = vmatpush1.msra.mxu0 0.0
        %2122 = vmatprep.subr.mxu0 0.0
        %2123 = vmatpush1.msra.mxu0 0.0
        %2124 = vmatprep.subr.mxu0 0.0
        %2125 = vmatpush1.msra.mxu0 0.0
        %2126 = vmatprep.subr.mxu0 0.0
        %2127 = vmatpush1.msra.mxu0 0.0
        %2128 = vmatprep.subr.mxu0 0.0
        %2129 = vmatpush1.msra.mxu0 0.0
        %2130 = vmatprep.subr.mxu0 0.0
        %2131 = vmatpush1.msra.mxu0 %v2098
        %2132 = vmatprep.subr.mxu0 0.0
        %2133 = vmatpush1.msra.mxu0 %v2097
        %2134 = vmatprep.subr.mxu0 0.0
        %2135 = vmatpush1.msra.mxu0 %v2096
        %2136 = vmatprep.subr.mxu0 0.0
        %2137 = vmatpush1.msra.mxu0 %v2095
        %2138 = vmatprep.subr.mxu0 0.0
        %2139 = vmatpush2.msra.mxu0 0.0
        %2140 = vmatprep.subr.mxu0 0.0
        %2141 = vmatpush2.msra.mxu0 0.0
        %2142 = vmatprep.subr.mxu0 0.0
        %2143 = vmatpush2.msra.mxu0 0.0
        %2144 = vmatprep.subr.mxu0 0.0
        %2145 = vmatpush2.msra.mxu0 0.0
        %2146 = vmatprep.subr.mxu0 0.0
        %2147 = vmatpush2.msra.mxu0 0.0
        %2148 = vmatprep.subr.mxu0 0.0
        %2149 = vmatpush2.msra.mxu0 0.0
        %2150 = vmatprep.subr.mxu0 0.0
        %2151 = vmatpush2.msra.mxu0 0.0
        %2152 = vmatprep.subr.mxu0 0.0
        %2153 = vmatpush2.msra.mxu0 0.0
        %2154 = vmatprep.subr.mxu0 0.0
        %2155 = vmatpush2.msra.mxu0 0.0
        %2156 = vmatprep.subr.mxu0 0.0
        %2157 = vmatpush2.msra.mxu0 0.0
        %2158 = vmatprep.subr.mxu0 0.0
        %2159 = vmatpush2.msra.mxu0 0.0
        %2160 = vmatprep.subr.mxu0 0.0
        %2161 = vmatpush2.msra.mxu0 0.0
        %2162 = vmatprep.subr.mxu0 0.0
        %2163 = vmatpush2.msra.mxu0 0.0
        %2164 = vmatprep.subr.mxu0 0.0
        %2165 = vmatpush2.msra.mxu0 0.0
        %2166 = vmatprep.subr.mxu0 0.0
        %2167 = vmatpush2.msra.mxu0 0.0
        %2168 = vmatprep.subr.mxu0 0.0
        %2169 = vmatpush2.msra.mxu0 0.0
        %2170 = vmatprep.mubr.f32.mxu0 0.0
        %2171 = vmatmul.mubr.f32.gmra.mxu0 %v2104
        %v2172 = vpop.f32.mrf.mxu0
        %v2173 = vadd.f32 %v2102, %v2172
        %v2174 = vpop.f32.mrf.mxu0
        %2175 = vdwg.mxu0
        %v2176 = vadd.f32 %v2094, %v2173
        %v2177 = vsel %vm939, %v2176, 0.0
        %2178 = vadd.xlane.f32.xlu0 %v2177
        %v2179 = vpop.xlane.xlu0 %2178
        %v2180 = vmul.f32 %v2179, %v2074
        %v2181 = vsub.f32 %v2176, %v2180
        %v2182 = vmul.f32 %v2181, %v2181
        %v2183 = vsel %vm939, %v2182, 0.0
        %2184 = vadd.xlane.f32.xlu0 %v2183
        %v2185 = vpop.xlane.xlu0 %2184
        %v2186 = vmul.f32 %v2185, %v2074
        %v2187 = vadd.f32 %v2186, 1e-05
        %v2188 = vrsqrt.pop %v2187
        %v2189 = vmul.f32 %v2181, %v2188
        %v2190 = vlaneseq
        %v2191 = vshrl.u32 %v2190, 7
        %v2192 = vsub.s32 7, %v2191
        %v2193 = vrot.slane %v463, %v2192
        %v2194 = vmul.f32 %v2189, %v2193
        %v2195 = vlaneseq
        %v2196 = vshrl.u32 %v2195, 7
        %v2197 = vsub.s32 0, %v2196
        %v2198 = vrot.slane %v464, %v2197
        %v2199 = vadd.f32 %v2194, %v2198
        %2200 = vst.msk [vmem:[%s461] sm:$0xff] %vm939, %v2199
        %s2201 = sand.u32 %s233, 1
        %s2202 = scalar_lea.sflag [#allocation6], %s2201
        %s2203 = sand.u32 %s233, 1
        %s2204 = smul.addr %s2203, 8
        %s2205 = scalar_lea.vmem [#allocation18], %s2204
        // Predicated region
        $region89: #{tpu_custom_call.1} parent=51 // pred_check
          %p2206 = pneg %p243
        $region90: #{tpu_custom_call.1} parent=51 // pred_check_branch
          %2208 = sbr.rel (%p2206) target = $region92
        $region91: #{tpu_custom_call.1} parent=51 // pred_region
          %s2210 = ssub.s32 128, 128
          %2211 = vsyncadd %s2202, %s2210
          %s2212 = sadd.s32 %s36, %s35
          %s2213 = smul.addr %s2212, 128
          %s2214 = scalar_lea.hbm %s8, %s2213
          %s2216 = sshll.u32 %s2205, 4
          %s2217 = int_to_ptr.vmem [resolvable:$true] %s2216
          %2219 = dma.vmem_to_hbm [thread:$0]  %s2217, 128, %s2214, %s2202
        $region92: #{tpu_custom_call.1} parent=51 // pred_fallthru
          _
      $region52: #{tpu_custom_call.1} parent=5 // pred_fallthru
        _
      %p2220 = scmp.le.s32.totalorder 2, %s26
      // Predicated region
      $region93: #{tpu_custom_call.1} parent=5 // pred_check
        %p2221 = pneg %p2220
      $region94: #{tpu_custom_call.1} parent=5 // pred_check_branch
        %2223 = sbr.rel (%p2221) target = $region96
      $region95: #{tpu_custom_call.1} parent=5 // pred_region
        %s2224 = ssub.s32 %s26, 2
        // Predicated region
        $region97: #{tpu_custom_call.1} parent=95 // pred_check
          %p2225 = pneg %p249
        $region98: #{tpu_custom_call.1} parent=95 // pred_check_branch
          %2227 = sbr.rel (%p2225) target = $region100
        $region99: #{tpu_custom_call.1} parent=95 // pred_region
          %s2228 = sand.u32 %s234, 1
          %s2229 = scalar_lea.sflag [#allocation6], %s2228
          %s2230 = sand.u32 %s234, 1
          %s2231 = smul.addr %s2230, 8
          %s2232 = scalar_lea.vmem [#allocation18], %s2231
          %2233 = dma.done %s2229, 128
        $region100: #{tpu_custom_call.1} parent=95 // pred_fallthru
          _
      $region96: #{tpu_custom_call.1} parent=5 // pred_fallthru
        _
    $region6: #{tpu_custom_call.1} parent=1 // loop_footer
      %s30 = sadd.s32 1, %s26
    $region7: #{tpu_custom_call.1} parent=1 // loop_footer_branch
      %25 = sbr.rel target = $region3
    $region8: #{tpu_custom_call.1} parent=1 // loop_exit
      _
    %2234 = vsyncpa [#allocation5], 1
    %s2235 = scalar_lea.sflag [#allocation5], 1
    %2236 = vsyncpa %s2235, 1
    %2237 = vsyncpa [#allocation8], 1
    %s2238 = scalar_lea.sflag [#allocation8], 1
    %2239 = vsyncpa %s2238, 1
    %2240 = vsyncpa [#allocation11], 1
    %2241 = vsyncpa [#allocation14], 1
    %2242 = vsyncpa [#allocation17], 1
    %2243 = vsyncpa [#allocation6], 1
    %s2244 = scalar_lea.sflag [#allocation6], 1
    %2245 = vsyncpa %s2244, 1

</llo_original>
